<compile_context>
chip_gen: v7x
topology: tpu7x:2x2x1
jax: 0.10.0
libtpu: 0.0.40
codegen_flags: <defaults>
</compile_context>

<pallas_src>
import functools

import jax
import jax.numpy as jnp
import numpy as np
from jax.experimental import pallas as pl
from jax.experimental.pallas import tpu as pltpu

C_MID = 64     # conv1 output channels (fixed by the module)
BN_EPS = 1e-5  # must match the PyTorch BatchNorm2d eps


def _interp_matrix(out_size: int, in_size: int) -> jnp.ndarray:
    """Bilinear (align_corners=True) 1-D interpolation matrix (out_size, in_size)."""
    if out_size == 1:
        src = jnp.zeros((1,), jnp.float32)
    else:
        src = jnp.arange(out_size, dtype=jnp.float32) * (in_size - 1) / (out_size - 1)
    lo = jnp.clip(jnp.floor(src).astype(jnp.int32), 0, in_size - 1)
    hi = jnp.clip(lo + 1, 0, in_size - 1)
    frac = src - lo.astype(jnp.float32)
    rows = jnp.arange(out_size)
    m = jnp.zeros((out_size, in_size), jnp.float32)
    m = m.at[rows, lo].add(1.0 - frac)
    m = m.at[rows, hi].add(frac)
    return m


def prepare_out_block_params(params, cin, h, w, H, W):
    """One-time folding of module parameters into kernel operands (hoisted out
    of the per-call path per the perf review)."""
    w1 = np.asarray(params["w1"], np.float32)            # (64, cin, 3, 3)
    gamma = np.asarray(params["gamma"], np.float32)
    beta = np.asarray(params["beta"], np.float32)
    mean = np.asarray(params["mean"], np.float32)
    var = np.asarray(params["var"], np.float32)
    w2 = np.asarray(params["w2"], np.float32).reshape(C_MID)
    b2 = np.asarray(params["b2"], np.float32).reshape(1)

    scale = gamma / np.sqrt(var + BN_EPS)
    shift = beta - mean * scale
    w1s = w1 * scale[:, None, None, None]                # BN scale folded into conv

    k0 = (w + 2) * cin
    k1 = k0 + 1                                          # + ones column (BN shift fold)
    wc = w * C_MID

    # Banded conv matrices, one per kernel-row offset di:
    #   A[di][(j+dj)*cin + ci, j*64 + co] = w1[co, ci, di, dj] * scale[co]
    # so that  y_slab = sum_di  xp_slab[di:di+h, :] @ A[di]
    # lands directly in (h, w*64) layout with BN scale applied.
    a = np.zeros((3, k1, wc), np.float32)
    for di in range(3):
        for dj in range(3):
            tap = w1s[:, :, di, dj].T                    # (cin, 64)
            for j in range(w):
                a[di,
                  (j + dj) * cin:(j + dj + 1) * cin,
                  j * C_MID:(j + 1) * C_MID] += tap
    # BN shift folded as an extra K row that is hit by the ones column (di == 0 only).
    a[0, k0, :] = np.tile(shift, w)

    rh = _interp_matrix(H, h)                            # (H, h)  height interp
    rw = _interp_matrix(W, w)                            # (W, w)  width interp
    w_pad = pl.cdiv(W, 128) * 128
    # Width interp fused with the 1x1 conv: rww2[j*64+c, Wo] = rw[Wo, j] * w2[c],
    # zero-padded to a 128-lane multiple for unmasked (lane-dense) stores.
    rw_w2 = (rw.T[:, None, :] * jnp.asarray(w2)[None, :, None]).reshape(wc, W)
    rw_w2 = jnp.pad(rw_w2, ((0, 0), (0, w_pad - W)))

    return {
        "a_mats": jnp.asarray(a, dtype=jnp.bfloat16),    # (3, k1, w*64) bf16
        "rww2": rw_w2.astype(jnp.float32),               # (w*64, W_pad) f32
        "rh": rh.astype(jnp.float32),                    # (H, h)        f32
        "b2": jnp.asarray(b2, jnp.float32),              # (1,)          f32
    }


def _out_block_kernel(xp_ref, a_ref, rww2_ref, rh_ref, b2_ref, o_ref):
    # xp_ref  : (B, h+2, (w+2)*cin+1)  bf16  zero-padded input slab + ones column
    # a_ref   : (3, k1, w*64)          bf16  banded 3x3-conv matrices (BN folded)
    # rww2_ref: (w*64, W_pad)          f32   width-interp fused with 1x1-conv w2
    # rh_ref  : (H, h)                 f32   height-interp matrix
    # b2_ref  : (1,)  SMEM             f32   1x1-conv bias
    # o_ref   : (B, H, W_pad)          f32   lane-dense output block
    batch = o_ref.shape[0]
    h = rh_ref.shape[1]

    # Grid-invariant operands loaded once per step (shared across the B images).
    a0 = a_ref[0]
    a1 = a_ref[1]
    a2 = a_ref[2]
    rww2 = rww2_ref[...]
    rh = rh_ref[...]
    bias = b2_ref[0]

    for b in range(batch):            # static unroll; B images per grid step
        x_all = xp_ref[b]             # (h+2, k1) bf16
        # 3x3 conv (+ BN scale & shift via the ones column) as three row-shifted
        # bf16 matmuls with f32 accumulation; result lands directly in the
        # (h, w*64) layout -> no relayout before the width-interp matmul.
        s = jnp.dot(x_all[0:h, :], a0, preferred_element_type=jnp.float32)
        s = s + jnp.dot(x_all[1:h + 1, :], a1, preferred_element_type=jnp.float32)
        s = s + jnp.dot(x_all[2:h + 2, :], a2, preferred_element_type=jnp.float32)
        y = jnp.maximum(s, 0.0)                                    # (h, w*64)
        # Fused width-interp + 1x1-conv channel contraction.
        t = jnp.dot(y, rww2, preferred_element_type=jnp.float32)   # (h, W_pad)
        # Height interp, bias, lane-dense store.
        o_ref[b] = jnp.dot(rh, t, preferred_element_type=jnp.float32) + bias


@functools.partial(jax.jit, static_argnames=("H", "W"))
def out_block_forward(x_nchw, prep, H, W):
    """x_nchw: (N, Cin, h, w) float32. Returns (N, 1, H, W) float32."""
    N, cin, h, w = x_nchw.shape
    k1 = (w + 2) * cin + 1
    wc = w * C_MID
    w_pad = prep["rww2"].shape[1]

    # Layout glue (all fused under jit): NCHW -> zero-padded NHWC slab with a
    # trailing ones column (BN-shift fold), cast to bf16 for the MXU.
    xp = jnp.transpose(x_nchw, (0, 2, 3, 1))
    xp = jnp.pad(xp, ((0, 0), (1, 1), (1, 1), (0, 0)))
    xp = xp.reshape(N, h + 2, (w + 2) * cin)
    xp = jnp.pad(xp, ((0, 0), (0, 0), (0, 1)), constant_values=1.0)
    xp = xp.astype(jnp.bfloat16)                                   # (N, h+2, k1)

    # 2 grid steps when possible (keeps both v7x TensorCores busy); B images
    # per step amortize per-step overhead and MXU weight pushes.
    steps = 2 if (N >= 2 and N % 2 == 0) else 1
    B = N // steps

    out_padded = pl.pallas_call(
        _out_block_kernel,
        out_shape=jax.ShapeDtypeStruct((N, H, w_pad), jnp.float32),
        grid=(steps,),
        in_specs=[
            pl.BlockSpec((B, h + 2, k1), lambda g: (g, 0, 0)),
            # Grid-invariant operands: constant index_map -> copied once.
            pl.BlockSpec((3, k1, wc), lambda g: (0, 0, 0)),
            pl.BlockSpec((wc, w_pad), lambda g: (0, 0)),
            pl.BlockSpec((H, h), lambda g: (0, 0)),
            pl.BlockSpec(memory_space=pltpu.MemorySpace.SMEM),
        ],
        out_specs=pl.BlockSpec((B, H, w_pad), lambda g: (g, 0, 0)),
        compiler_params=pltpu.CompilerParams(
            dimension_semantics=("parallel",)),
    )(xp, prep["a_mats"], prep["rww2"], prep["rh"], prep["b2"])

    if w_pad == W:                       # skip the slice when already 128-aligned
        return out_padded[:, None, :, :]
    return out_padded[:, None, :, :W]    # (N, 1, H, W)


def reference_forward(x_nchw, params, H, W):
    """Pure-JAX f32 reference (NCHW, mirrors the PyTorch forward in eval mode)."""
    w1, gamma, beta, mean, var, w2, b2 = (
        params["w1"], params["gamma"], params["beta"], params["mean"],
        params["var"], params["w2"], params["b2"])
    y = jax.lax.conv_general_dilated(
        x_nchw, w1, window_strides=(1, 1), padding=((1, 1), (1, 1)),
        dimension_numbers=("NCHW", "OIHW", "NCHW"))
    scale = gamma / jnp.sqrt(var + BN_EPS)
    shift = beta - mean * scale
    y = y * scale[None, :, None, None] + shift[None, :, None, None]
    y = jnp.maximum(y, 0.0)
    rh = _interp_matrix(H, y.shape[2])
    rw = _interp_matrix(W, y.shape[3])
    y = jnp.einsum("Hh,nchw,Ww->ncHW", rh, y, rw)
    out = jnp.einsum("ncHW,c->nHW", y, w2.reshape(C_MID)) + b2[0]
    return out[:, None, :, :]


if __name__ == "__main__":
    key = jax.random.PRNGKey(0)
    N, CIN, h, w = 2, 4, 16, 16
    H, W = 24, 24

    ks = jax.random.split(key, 8)
    x = jax.random.normal(ks[0], (N, CIN, h, w), jnp.float32)
    params = {
        "w1": jax.random.normal(ks[1], (C_MID, CIN, 3, 3), jnp.float32) * 0.1,
        "gamma": 1.0 + 0.1 * jax.random.normal(ks[2], (C_MID,), jnp.float32),
        "beta": 0.1 * jax.random.normal(ks[3], (C_MID,), jnp.float32),
        "mean": 0.05 * jax.random.normal(ks[4], (C_MID,), jnp.float32),
        "var": 1.0 + 0.1 * jax.random.uniform(ks[5], (C_MID,), jnp.float32),
        "w2": jax.random.normal(ks[6], (1, C_MID, 1, 1), jnp.float32) * 0.1,
        "b2": 0.1 * jax.random.normal(ks[7], (1,), jnp.float32),
    }

    prep = prepare_out_block_params(params, CIN, h, w, H, W)   # one-time fold
    out = out_block_forward(x, prep, H, W)
    out = jax.block_until_ready(out)

    ref = jax.block_until_ready(reference_forward(x, params, H, W))
    assert out.shape == (N, 1, H, W), out.shape
    # Tolerance deliberately loosened vs the pure-f32 path: the conv matmul
    # operands are bf16 (f32 accumulation); observed error is a few 1e-3 at
    # these magnitudes (~0.4).
    max_err = float(jnp.max(jnp.abs(out - ref)))
    assert jnp.allclose(out, ref, atol=3e-2, rtol=3e-2), max_err

    print("KERNEL_OK")
</pallas_src>

<mosaic_0001>
module attributes {stable_mosaic.version = 11 : i64} {
  func.func @_out_block_kernel(%arg0: i32, %arg1: memref<1x18x73xbf16, #tpu.memory_space<vmem>>, %arg2: memref<3x73x1024xbf16, #tpu.memory_space<vmem>>, %arg3: memref<1024x128xf32, #tpu.memory_space<vmem>>, %arg4: memref<24x16xf32, #tpu.memory_space<vmem>>, %arg5: memref<1xf32, #tpu.memory_space<smem>>, %arg6: memref<1x24x128xf32, #tpu.memory_space<vmem>>) attributes {dimension_semantics = [#tpu.dimension_semantics<parallel>], iteration_bounds = array<i64: 2>, scalar_prefetch = 0 : i64, scratch_operands = 0 : i64, tpu.core_type = #tpu.core_type<tc>, window_params = [{transform_indices = @transform_0, window_bounds = array<i64: 1, 18, 73>}, {pipeline_mode = #tpu.pipeline_mode<synchronous>, transform_indices = @transform_1, window_bounds = array<i64: 3, 73, 1024>}, {pipeline_mode = #tpu.pipeline_mode<synchronous>, transform_indices = @transform_2, window_bounds = array<i64: 1024, 128>}, {pipeline_mode = #tpu.pipeline_mode<synchronous>, transform_indices = @transform_3, window_bounds = array<i64: 24, 16>}, {transform_indices = @transform_4, window_bounds = array<i64: 1>}, {transform_indices = @transform_5, window_bounds = array<i64: 1, 24, 128>}]} {
    %c0 = arith.constant 0 : index
    %c0_0 = arith.constant 0 : index
    %c0_1 = arith.constant 0 : index
    %0 = vector.load %arg2[%c0, %c0_0, %c0_1] : memref<3x73x1024xbf16, #tpu.memory_space<vmem>>, vector<1x73x1024xbf16>
    %1 = vector.shape_cast %0 : vector<1x73x1024xbf16> to vector<73x1024xbf16>
    %c1 = arith.constant 1 : index
    %c0_2 = arith.constant 0 : index
    %c0_3 = arith.constant 0 : index
    %2 = vector.load %arg2[%c1, %c0_2, %c0_3] : memref<3x73x1024xbf16, #tpu.memory_space<vmem>>, vector<1x73x1024xbf16>
    %3 = vector.shape_cast %2 : vector<1x73x1024xbf16> to vector<73x1024xbf16>
    %c2 = arith.constant 2 : index
    %c0_4 = arith.constant 0 : index
    %c0_5 = arith.constant 0 : index
    %4 = vector.load %arg2[%c2, %c0_4, %c0_5] : memref<3x73x1024xbf16, #tpu.memory_space<vmem>>, vector<1x73x1024xbf16>
    %5 = vector.shape_cast %4 : vector<1x73x1024xbf16> to vector<73x1024xbf16>
    %c0_6 = arith.constant 0 : index
    %c0_7 = arith.constant 0 : index
    %6 = vector.load %arg3[%c0_6, %c0_7] : memref<1024x128xf32, #tpu.memory_space<vmem>>, vector<1024x128xf32>
    %c0_8 = arith.constant 0 : index
    %c0_9 = arith.constant 0 : index
    %7 = vector.load %arg4[%c0_8, %c0_9] : memref<24x16xf32, #tpu.memory_space<vmem>>, vector<24x16xf32>
    %c0_10 = arith.constant 0 : index
    %8 = memref.load %arg5[%c0_10] : memref<1xf32, #tpu.memory_space<smem>>
    %c0_11 = arith.constant 0 : index
    %c0_12 = arith.constant 0 : index
    %c0_13 = arith.constant 0 : index
    %9 = vector.load %arg1[%c0_11, %c0_12, %c0_13] : memref<1x18x73xbf16, #tpu.memory_space<vmem>>, vector<1x18x73xbf16>
    %10 = vector.shape_cast %9 : vector<1x18x73xbf16> to vector<18x73xbf16>
    %11 = vector.extract_strided_slice %10 {offsets = [0, 0], sizes = [16, 73], strides = [1, 1]} : vector<18x73xbf16> to vector<16x73xbf16>
    %cst = arith.constant dense<0.000000e+00> : vector<16x1024xf32>
    %12 = tpu.matmul %11, %1, %cst {dimension_numbers = #tpu.dot_dimension_numbers<[1], [0], [0], [1], [0, 0, 1, 1], [], []>} : vector<16x73xbf16>, vector<73x1024xbf16>, vector<16x1024xf32> -> vector<16x1024xf32>
    %13 = vector.extract_strided_slice %10 {offsets = [1, 0], sizes = [16, 73], strides = [1, 1]} : vector<18x73xbf16> to vector<16x73xbf16>
    %cst_14 = arith.constant dense<0.000000e+00> : vector<16x1024xf32>
    %14 = tpu.matmul %13, %3, %cst_14 {dimension_numbers = #tpu.dot_dimension_numbers<[1], [0], [0], [1], [0, 0, 1, 1], [], []>} : vector<16x73xbf16>, vector<73x1024xbf16>, vector<16x1024xf32> -> vector<16x1024xf32>
    %15 = arith.addf %12, %14 : vector<16x1024xf32>
    %16 = vector.extract_strided_slice %10 {offsets = [2, 0], sizes = [16, 73], strides = [1, 1]} : vector<18x73xbf16> to vector<16x73xbf16>
    %cst_15 = arith.constant dense<0.000000e+00> : vector<16x1024xf32>
    %17 = tpu.matmul %16, %5, %cst_15 {dimension_numbers = #tpu.dot_dimension_numbers<[1], [0], [0], [1], [0, 0, 1, 1], [], []>} : vector<16x73xbf16>, vector<73x1024xbf16>, vector<16x1024xf32> -> vector<16x1024xf32>
    %18 = arith.addf %15, %17 : vector<16x1024xf32>
    %cst_16 = arith.constant 0.000000e+00 : f32
    %19 = vector.broadcast %cst_16 : f32 to vector<16x1024xf32>
    %20 = arith.maximumf %18, %19 : vector<16x1024xf32>
    %cst_17 = arith.constant dense<0.000000e+00> : vector<16x128xf32>
    %21 = tpu.matmul %20, %6, %cst_17 {dimension_numbers = #tpu.dot_dimension_numbers<[1], [0], [0], [1], [0, 0, 1, 1], [], []>} : vector<16x1024xf32>, vector<1024x128xf32>, vector<16x128xf32> -> vector<16x128xf32>
    %cst_18 = arith.constant dense<0.000000e+00> : vector<24x128xf32>
    %22 = tpu.matmul %7, %21, %cst_18 {dimension_numbers = #tpu.dot_dimension_numbers<[1], [0], [0], [1], [0, 0, 1, 1], [], []>} : vector<24x16xf32>, vector<16x128xf32>, vector<24x128xf32> -> vector<24x128xf32>
    %23 = vector.broadcast %8 : f32 to vector<24x128xf32>
    %24 = arith.addf %22, %23 : vector<24x128xf32>
    %c0_19 = arith.constant 0 : index
    %c0_20 = arith.constant 0 : index
    %c0_21 = arith.constant 0 : index
    %25 = vector.load %arg6[%c0_19, %c0_20, %c0_21] : memref<1x24x128xf32, #tpu.memory_space<vmem>>, vector<1x24x128xf32>
    %26 = vector.shape_cast %25 : vector<1x24x128xf32> to vector<24x128xf32>
    %27 = vector.shape_cast %24 : vector<24x128xf32> to vector<1x24x128xf32>
    tpu.vector_store %arg6[%c0_19, %c0_20, %c0_21], %27 {strides = array<i32>} : memref<1x24x128xf32, #tpu.memory_space<vmem>>, vector<1x24x128xf32>,
    return
  }
  func.func @transform_0(%arg0: i32) -> (i32, i32, i32) {
    %c0_i32 = arith.constant 0 : i32
    %c0_i32_0 = arith.constant 0 : i32
    %c0_i32_1 = arith.constant 0 : i32
    return %arg0, %c0_i32, %c0_i32_0 : i32, i32, i32
  }
  func.func @transform_1(%arg0: i32) -> (i32, i32, i32) {
    %c0_i32 = arith.constant 0 : i32
    %c0_i32_0 = arith.constant 0 : i32
    %c0_i32_1 = arith.constant 0 : i32
    %c0_i32_2 = arith.constant 0 : i32
    return %c0_i32, %c0_i32_0, %c0_i32_1 : i32, i32, i32
  }
  func.func @transform_2(%arg0: i32) -> (i32, i32) {
    %c0_i32 = arith.constant 0 : i32
    %c0_i32_0 = arith.constant 0 : i32
    %c0_i32_1 = arith.constant 0 : i32
    return %c0_i32, %c0_i32_0 : i32, i32
  }
  func.func @transform_3(%arg0: i32) -> (i32, i32) {
    %c0_i32 = arith.constant 0 : i32
    %c0_i32_0 = arith.constant 0 : i32
    %c0_i32_1 = arith.constant 0 : i32
    return %c0_i32, %c0_i32_0 : i32, i32
  }
  func.func @transform_4(%arg0: i32) -> i32 {
    %c0_i32 = arith.constant 0 : i32
    %c0_i32_0 = arith.constant 0 : i32
    return %c0_i32 : i32
  }
  func.func @transform_5(%arg0: i32) -> (i32, i32, i32) {
    %c0_i32 = arith.constant 0 : i32
    %c0_i32_0 = arith.constant 0 : i32
    %c0_i32_1 = arith.constant 0 : i32
    return %arg0, %c0_i32, %c0_i32_0 : i32, i32, i32
  }
}

</mosaic_0001>

<llo_original>
// kernel: out_block_forward.1
$region0: #{out_block_forward.1}
  #allocation0 [shape = 'u32[]', space=smem, size = 0x4, offset = 0x4, fixed_abs, tag = 'smem constant byte address 0x4 - core index']
  #allocation1 [shape = 'u32[144,128]{1,0:T(1,128)}', space=vmem, size = 0x12000, scoped, tag = 'internal scratch']
  #allocation2 [shape = 'f32[1]{0:T(128)S(6)}', space=smem, size = 0x200, scoped, tag = 'scoped memory for out_block_forward.1']
  %s0 = inlined_call_operand.vmem [shape: bf16[2,18,73], index: 0, kind: input, shape index: {}]
  %s1 = inlined_call_operand.hbm [shape: bf16[3,73,1024], index: 1, kind: input, shape index: {}]
  %s2 = inlined_call_operand.hbm [shape: f32[1024,128], index: 2, kind: input, shape index: {}]
  %s3 = inlined_call_operand.vmem [shape: f32[24,16], index: 3, kind: input, shape index: {}]
  %s4 = inlined_call_operand.<no memory space> [shape: f32[1], index: 4, kind: input, shape index: {}]
  %s5 = inlined_call_operand.vmem [shape: f32[2,24,128], index: 5, kind: output, shape index: {}]
  %s6 = sld [smem:[#allocation0]]
  $region61: #{out_block_forward.1} parent=0
    _
  %s8 = ssub.s32 1, %s6
  %s9 = scalar_select 0, %s8, %s6
  %10 = sst [smem:[#allocation2]] %s4
  $region1: #{out_block_forward.1} parent=0
    #allocation3 [shape = 'u8[491520]{0}', space=vmem, size = 0x78000, scoped, tag = 'input window, operand 1, single buffered']
    #allocation4 [shape = 's32[2]{0}', space=sflag, size = 0x8, scoped, tag = 'scoped memory for out_block_forward.1']
    #allocation5 [shape = 'u8[524288]{0}', space=vmem, size = 0x80000, scoped, tag = 'input window, operand 2, single buffered']
    #allocation6 [shape = 's32[1]{0}', space=sflag, size = 0x4, scoped, tag = 'scoped memory for out_block_forward.1']
    %11 = vsyncpa [#allocation4], 0
    %12 = vsyncpa [#allocation6], 0
    loop: start=0, step=1, limit=4
    $region2: #{out_block_forward.1} parent=1 // loop_pre_header
      _
    $region3: #{out_block_forward.1} parent=1 // loop_header
      %s14 = sphi 0, %s18
      %p15 = scmp.ge.s32.totalorder %s14, 4
      %s24 = sphi 0, %s26
      %s27 = sphi 0, %s24
      %s28 = sphi 0, %s27
      %s44 = sphi 0, %s28
      %s48 = sphi 0, %s48
      %s50 = sphi 0, %s48
      %s51 = sphi 0, %s50
      %s65 = sphi 0, %s51
      %s69 = sphi 0, %s69
      %s71 = sphi 0, %s69
      %s72 = sphi 0, %s71
      %s86 = sphi 0, %s72
      %s90 = sphi 0, %s90
      %s92 = sphi 0, %s90
      %s93 = sphi 0, %s92
      %s107 = sphi 0, %s93
      %s111 = sphi 0, %s111
      %s113 = sphi 0, %s111
      %s114 = sphi 0, %s113
      %s128 = sphi 0, %s114
      %s134 = sphi 0, %s136
      %s137 = sphi 0, %s134
      %s138 = sphi 0, %s137
      %s154 = sphi 0, %s138
    $region4: #{out_block_forward.1} parent=1 // loop_header_branch
      %17 = sbr.rel (%p15) target = $region8
    $region5: #{out_block_forward.1} parent=1 // loop_body
      %s19 = ssub.s32 %s14, 1
      %s20 = ssub.s32 %s14, 2
      %s21 = sadd.s32 %s14, 1
      %s22 = ssub.s32 %s14, %s21
      %p23 = scmp.eq.s32.totalorder %s22, 0
      %s25 = sadd.s32 %s24, 1
      %s26 = scalar_select %p23, %s24, %s25
      %p29 = pneg %p23
      %p30 = scmp.eq.s32.totalorder %s14, 1
      %p31 = por %p29, %p30
      %p32 = scmp.ne.s32.totalorder %s24, %s27
      %p33 = scmp.eq.s32.totalorder %s14, 0
      %p34 = por %p32, %p33
      %p35 = scmp.ne.s32.totalorder %s24, %s27
      %p36 = scmp.eq.s32.totalorder %s19, 1
      %p37 = por %p35, %p36
      %p38 = scmp.ne.s32.totalorder %s27, %s28
      %p39 = scmp.eq.s32.totalorder %s19, 0
      %p40 = por %p38, %p39
      %p41 = scmp.ne.s32.totalorder %s27, %s28
      %p42 = scmp.eq.s32.totalorder %s20, 1
      %p43 = por %p41, %p42
      %p45 = scmp.ne.s32.totalorder %s28, %s44
      %p46 = scmp.eq.s32.totalorder %s20, 0
      %p47 = por %p45, %p46
      %s49 = sadd.s32 %s48, 1
      %p52 = scmp.eq.s32.totalorder %s14, 1
      %p53 = scmp.ne.s32.totalorder %s48, %s50
      %p54 = scmp.eq.s32.totalorder %s14, 0
      %p55 = por %p53, %p54
      %p56 = scmp.ne.s32.totalorder %s48, %s50
      %p57 = scmp.eq.s32.totalorder %s19, 1
      %p58 = por %p56, %p57
      %p59 = scmp.ne.s32.totalorder %s50, %s51
      %p60 = scmp.eq.s32.totalorder %s19, 0
      %p61 = por %p59, %p60
      %p62 = scmp.ne.s32.totalorder %s50, %s51
      %p63 = scmp.eq.s32.totalorder %s20, 1
      %p64 = por %p62, %p63
      %p66 = scmp.ne.s32.totalorder %s51, %s65
      %p67 = scmp.eq.s32.totalorder %s20, 0
      %p68 = por %p66, %p67
      %s70 = sadd.s32 %s69, 1
      %p73 = scmp.eq.s32.totalorder %s14, 1
      %p74 = scmp.ne.s32.totalorder %s69, %s71
      %p75 = scmp.eq.s32.totalorder %s14, 0
      %p76 = por %p74, %p75
      %p77 = scmp.ne.s32.totalorder %s69, %s71
      %p78 = scmp.eq.s32.totalorder %s19, 1
      %p79 = por %p77, %p78
      %p80 = scmp.ne.s32.totalorder %s71, %s72
      %p81 = scmp.eq.s32.totalorder %s19, 0
      %p82 = por %p80, %p81
      %p83 = scmp.ne.s32.totalorder %s71, %s72
      %p84 = scmp.eq.s32.totalorder %s20, 1
      %p85 = por %p83, %p84
      %p87 = scmp.ne.s32.totalorder %s72, %s86
      %p88 = scmp.eq.s32.totalorder %s20, 0
      %p89 = por %p87, %p88
      %s91 = sadd.s32 %s90, 1
      %p94 = scmp.eq.s32.totalorder %s14, 1
      %p95 = scmp.ne.s32.totalorder %s90, %s92
      %p96 = scmp.eq.s32.totalorder %s14, 0
      %p97 = por %p95, %p96
      %p98 = scmp.ne.s32.totalorder %s90, %s92
      %p99 = scmp.eq.s32.totalorder %s19, 1
      %p100 = por %p98, %p99
      %p101 = scmp.ne.s32.totalorder %s92, %s93
      %p102 = scmp.eq.s32.totalorder %s19, 0
      %p103 = por %p101, %p102
      %p104 = scmp.ne.s32.totalorder %s92, %s93
      %p105 = scmp.eq.s32.totalorder %s20, 1
      %p106 = por %p104, %p105
      %p108 = scmp.ne.s32.totalorder %s93, %s107
      %p109 = scmp.eq.s32.totalorder %s20, 0
      %p110 = por %p108, %p109
      %s112 = sadd.s32 %s111, 1
      %p115 = scmp.eq.s32.totalorder %s14, 1
      %p116 = scmp.ne.s32.totalorder %s111, %s113
      %p117 = scmp.eq.s32.totalorder %s14, 0
      %p118 = por %p116, %p117
      %p119 = scmp.ne.s32.totalorder %s111, %s113
      %p120 = scmp.eq.s32.totalorder %s19, 1
      %p121 = por %p119, %p120
      %p122 = scmp.ne.s32.totalorder %s113, %s114
      %p123 = scmp.eq.s32.totalorder %s19, 0
      %p124 = por %p122, %p123
      %p125 = scmp.ne.s32.totalorder %s113, %s114
      %p126 = scmp.eq.s32.totalorder %s20, 1
      %p127 = por %p125, %p126
      %p129 = scmp.ne.s32.totalorder %s114, %s128
      %p130 = scmp.eq.s32.totalorder %s20, 0
      %p131 = por %p129, %p130
      %s132 = ssub.s32 %s14, %s21
      %p133 = scmp.eq.s32.totalorder %s132, 0
      %s135 = sadd.s32 %s134, 1
      %s136 = scalar_select %p133, %s134, %s135
      %p139 = pneg %p133
      %p140 = scmp.eq.s32.totalorder %s14, 1
      %p141 = por %p139, %p140
      %p142 = scmp.ne.s32.totalorder %s134, %s137
      %p143 = scmp.eq.s32.totalorder %s14, 0
      %p144 = por %p142, %p143
      %p145 = scmp.ne.s32.totalorder %s134, %s137
      %p146 = scmp.eq.s32.totalorder %s19, 1
      %p147 = por %p145, %p146
      %p148 = scmp.ne.s32.totalorder %s137, %s138
      %p149 = scmp.eq.s32.totalorder %s19, 0
      %p150 = por %p148, %p149
      %p151 = scmp.ne.s32.totalorder %s137, %s138
      %p152 = scmp.eq.s32.totalorder %s20, 1
      %p153 = por %p151, %p152
      %p155 = scmp.ne.s32.totalorder %s138, %s154
      %p156 = scmp.eq.s32.totalorder %s20, 0
      %p157 = por %p155, %p156
      %p158 = scmp.le.s32.totalorder 1, %s14
      %p159 = scmp.lt.s32.totalorder %s14, 3
      %p160 = pnand %p158, %p159
      %p161 = pneg %p160
      // Predicated region
      $region9: #{out_block_forward.1} parent=5 // pred_check
        _
      $region10: #{out_block_forward.1} parent=5 // pred_check_branch
        %163 = sbr.rel (%p160) target = $region12
      $region11: #{out_block_forward.1} parent=5 // pred_region
        %s164 = ssub.s32 %s14, 1
        // Predicated region
        $region13: #{out_block_forward.1} parent=11 // pred_check
          %p165 = pneg %p61
        $region14: #{out_block_forward.1} parent=11 // pred_check_branch
          %167 = sbr.rel (%p165) target = $region16
        $region15: #{out_block_forward.1} parent=11 // pred_region
          %s169 = ssub.s32 15360, 15360
          %170 = vsyncadd [#allocation4], %s169
          %s171 = sshll.u32 [#allocation3], 4
          %s172 = int_to_ptr.vmem [resolvable:$true] %s171
          %177 = dma.hbm_to_vmem [thread:$0]  %s1, 15360, %s172, [#allocation4], 512, 512, 32
        $region16: #{out_block_forward.1} parent=11 // pred_fallthru
          _
        // Predicated region
        $region17: #{out_block_forward.1} parent=11 // pred_check
          %p178 = pneg %p82
        $region18: #{out_block_forward.1} parent=11 // pred_check_branch
          %180 = sbr.rel (%p178) target = $region20
        $region19: #{out_block_forward.1} parent=11 // pred_region
          %s182 = ssub.s32 16384, 16384
          %183 = vsyncadd [#allocation6], %s182
          %s184 = sshll.u32 [#allocation5], 4
          %s185 = int_to_ptr.vmem [resolvable:$true] %s184
          %190 = dma.hbm_to_vmem [thread:$0]  %s2, 16384, %s185, [#allocation6], 128, 128, 8
        $region20: #{out_block_forward.1} parent=11 // pred_fallthru
          _
        // Predicated region
        $region21: #{out_block_forward.1} parent=11 // pred_check
          %p191 = pneg %p103
        $region22: #{out_block_forward.1} parent=11 // pred_check_branch
          %193 = sbr.rel (%p191) target = $region24
        $region23: #{out_block_forward.1} parent=11 // pred_region
          _
        $region24: #{out_block_forward.1} parent=11 // pred_fallthru
          _
        // Predicated region
        $region25: #{out_block_forward.1} parent=11 // pred_check
          %p194 = pneg %p124
        $region26: #{out_block_forward.1} parent=11 // pred_check_branch
          %196 = sbr.rel (%p194) target = $region28
        $region27: #{out_block_forward.1} parent=11 // pred_region
          _
        $region28: #{out_block_forward.1} parent=11 // pred_fallthru
          _
      $region12: #{out_block_forward.1} parent=5 // pred_fallthru
        _
      %p197 = scmp.lt.s32.totalorder %s14, 2
      // Predicated region
      $region29: #{out_block_forward.1} parent=5 // pred_check
        %p198 = pneg %p197
      $region30: #{out_block_forward.1} parent=5 // pred_check_branch
        %200 = sbr.rel (%p198) target = $region32
      $region31: #{out_block_forward.1} parent=5 // pred_region
        // Predicated region
        $region33: #{out_block_forward.1} parent=31 // pred_check
          %p201 = pneg %p34
        $region34: #{out_block_forward.1} parent=31 // pred_check_branch
          %203 = sbr.rel (%p201) target = $region36
        $region35: #{out_block_forward.1} parent=31 // pred_region
          %p204 = scmp.lt.s32.totalorder %s14, 1
          %s205 = scalar_select %p204, %s14, 1
          %s206 = smul.addr %s205, 3
          %s207 = smul.addr %s206, 4
          %s208 = scalar_lea.vmem %s0, %s207
        $region36: #{out_block_forward.1} parent=31 // pred_fallthru
          _
      $region32: #{out_block_forward.1} parent=5 // pred_fallthru
        _
      %p209 = scmp.le.s32.totalorder 1, %s14
      %p210 = scmp.lt.s32.totalorder %s14, 3
      %p211 = pnand %p209, %p210
      %p212 = pneg %p211
      // Predicated region
      $region37: #{out_block_forward.1} parent=5 // pred_check
        _
      $region38: #{out_block_forward.1} parent=5 // pred_check_branch
        %214 = sbr.rel (%p211) target = $region40
      $region39: #{out_block_forward.1} parent=5 // pred_region
        %s215 = ssub.s32 %s14, 1
        // Predicated region
        $region41: #{out_block_forward.1} parent=39 // pred_check
          %p216 = pneg %p61
        $region42: #{out_block_forward.1} parent=39 // pred_check_branch
          %218 = sbr.rel (%p216) target = $region44
        $region43: #{out_block_forward.1} parent=39 // pred_region
          %219 = dma.done [#allocation4], 15360
        $region44: #{out_block_forward.1} parent=39 // pred_fallthru
          _
        // Predicated region
        $region45: #{out_block_forward.1} parent=39 // pred_check
          %p220 = pneg %p82
        $region46: #{out_block_forward.1} parent=39 // pred_check_branch
          %222 = sbr.rel (%p220) target = $region48
        $region47: #{out_block_forward.1} parent=39 // pred_region
          %223 = dma.done [#allocation6], 16384
        $region48: #{out_block_forward.1} parent=39 // pred_fallthru
          _
        %p224 = scmp.lt.s32.totalorder %s19, 1
        %s225 = scalar_select %p224, %s19, 1
        %s226 = smul.addr %s225, 3
        %s227 = smul.addr %s226, 4
        %s228 = scalar_lea.vmem %s0, %s227
        %p229 = pneg %p40
        %p230 = pneg %p37
        %p231 = pneg %p61
        %p232 = pneg %p58
        %p233 = pneg %p82
        %p234 = pneg %p79
        %p235 = pneg %p103
        %p236 = pneg %p100
        %p237 = pneg %p124
        %p238 = pneg %p121
        %p239 = pneg %p150
        %p240 = pneg %p147
        %p241 = scmp.lt.s32.totalorder %s19, 1
        %s242 = scalar_select %p241, %s19, 1
        %s243 = smul.addr %s242, 3
        %s244 = smul.addr %s243, 8
        %s245 = scalar_lea.vmem %s5, %s244
        %p246 = scmp.lt.s32.totalorder %s19, 1
        %s247 = scalar_select %p246, %s19, 1
        %s248 = smul.addr %s247, 3
        %s249 = smul.addr %s248, 4
        %s250 = scalar_lea.vmem %s0, %s249
        %p251 = scmp.lt.s32.totalorder %s19, 1
        %s252 = scalar_select %p251, %s19, 1
        %s253 = smul.addr %s252, 3
        %s254 = smul.addr %s253, 8
        %s255 = scalar_lea.vmem %s5, %s254
        %v257 = vld [vmem:[#allocation3] sm:$0xff]
        %v258 = vld [vmem:[#allocation3 + $0x8] sm:$0xff]
        %v259 = vld [vmem:[#allocation3 + $0x10] sm:$0xff]
        %v260 = vld [vmem:[#allocation3 + $0x18] sm:$0xff]
        %v261 = vld [vmem:[#allocation3 + $0x20] sm:$0xff]
        %v262 = vld [vmem:[#allocation3 + $0x28] sm:$0xff]
        %v263 = vld [vmem:[#allocation3 + $0x30] sm:$0xff]
        %v264 = vld [vmem:[#allocation3 + $0x38] sm:$0xff]
        %v265 = vld [vmem:[#allocation3 + $0x40] sm:$0xff]
        %v266 = vld [vmem:[#allocation3 + $0x48] sm:$0xff]
        %v267 = vld [vmem:[#allocation3 + $0x50] sm:$0xff]
        %v268 = vld [vmem:[#allocation3 + $0x58] sm:$0xff]
        %v269 = vld [vmem:[#allocation3 + $0x60] sm:$0xff]
        %v270 = vld [vmem:[#allocation3 + $0x68] sm:$0xff]
        %v271 = vld [vmem:[#allocation3 + $0x70] sm:$0xff]
        %v272 = vld [vmem:[#allocation3 + $0x78] sm:$0xff]
        %v273 = vld [vmem:[#allocation3 + $0x80] sm:$0xff]
        %v274 = vld [vmem:[#allocation3 + $0x88] sm:$0xff]
        %v275 = vld [vmem:[#allocation3 + $0x90] sm:$0xff]
        %v276 = vld [vmem:[#allocation3 + $0x98] sm:$0xff]
        %v277 = vld [vmem:[#allocation3 + $0xa0] sm:$0xff]
        %v278 = vld [vmem:[#allocation3 + $0xa8] sm:$0xff]
        %v279 = vld [vmem:[#allocation3 + $0xb0] sm:$0xff]
        %v280 = vld [vmem:[#allocation3 + $0xb8] sm:$0xff]
        %v281 = vld [vmem:[#allocation3 + $0xc0] sm:$0xff]
        %v282 = vld [vmem:[#allocation3 + $0xc8] sm:$0xff]
        %v283 = vld [vmem:[#allocation3 + $0xd0] sm:$0xff]
        %v284 = vld [vmem:[#allocation3 + $0xd8] sm:$0xff]
        %v285 = vld [vmem:[#allocation3 + $0xe0] sm:$0xff]
        %v286 = vld [vmem:[#allocation3 + $0xe8] sm:$0xff]
        %v287 = vld [vmem:[#allocation3 + $0xf0] sm:$0xff]
        %v288 = vld [vmem:[#allocation3 + $0xf8] sm:$0xff]
        %v289 = vld [vmem:[#allocation3 + $0x100] sm:$0xff]
        %v290 = vld [vmem:[#allocation3 + $0x108] sm:$0xff]
        %v291 = vld [vmem:[#allocation3 + $0x110] sm:$0xff]
        %v292 = vld [vmem:[#allocation3 + $0x118] sm:$0xff]
        %v293 = vld [vmem:[#allocation3 + $0x120] sm:$0x11]
        %v294 = vld [vmem:[#allocation3 + $0x128] sm:$0x11]
        %v295 = vld [vmem:[#allocation3 + $0x130] sm:$0x11]
        %v296 = vld [vmem:[#allocation3 + $0x138] sm:$0x11]
        %s297 = scalar_lea.vmem [#allocation3], 320
        %v298 = vld [vmem:[%s297] sm:$0xff]
        %v299 = vld [vmem:[%s297 + $0x8] sm:$0xff]
        %v300 = vld [vmem:[%s297 + $0x10] sm:$0xff]
        %v301 = vld [vmem:[%s297 + $0x18] sm:$0xff]
        %v302 = vld [vmem:[%s297 + $0x20] sm:$0xff]
        %v303 = vld [vmem:[%s297 + $0x28] sm:$0xff]
        %v304 = vld [vmem:[%s297 + $0x30] sm:$0xff]
        %v305 = vld [vmem:[%s297 + $0x38] sm:$0xff]
        %v306 = vld [vmem:[%s297 + $0x40] sm:$0xff]
        %v307 = vld [vmem:[%s297 + $0x48] sm:$0xff]
        %v308 = vld [vmem:[%s297 + $0x50] sm:$0xff]
        %v309 = vld [vmem:[%s297 + $0x58] sm:$0xff]
        %v310 = vld [vmem:[%s297 + $0x60] sm:$0xff]
        %v311 = vld [vmem:[%s297 + $0x68] sm:$0xff]
        %v312 = vld [vmem:[%s297 + $0x70] sm:$0xff]
        %v313 = vld [vmem:[%s297 + $0x78] sm:$0xff]
        %v314 = vld [vmem:[%s297 + $0x80] sm:$0xff]
        %v315 = vld [vmem:[%s297 + $0x88] sm:$0xff]
        %v316 = vld [vmem:[%s297 + $0x90] sm:$0xff]
        %v317 = vld [vmem:[%s297 + $0x98] sm:$0xff]
        %v318 = vld [vmem:[%s297 + $0xa0] sm:$0xff]
        %v319 = vld [vmem:[%s297 + $0xa8] sm:$0xff]
        %v320 = vld [vmem:[%s297 + $0xb0] sm:$0xff]
        %v321 = vld [vmem:[%s297 + $0xb8] sm:$0xff]
        %v322 = vld [vmem:[%s297 + $0xc0] sm:$0xff]
        %v323 = vld [vmem:[%s297 + $0xc8] sm:$0xff]
        %v324 = vld [vmem:[%s297 + $0xd0] sm:$0xff]
        %v325 = vld [vmem:[%s297 + $0xd8] sm:$0xff]
        %v326 = vld [vmem:[%s297 + $0xe0] sm:$0xff]
        %v327 = vld [vmem:[%s297 + $0xe8] sm:$0xff]
        %v328 = vld [vmem:[%s297 + $0xf0] sm:$0xff]
        %v329 = vld [vmem:[%s297 + $0xf8] sm:$0xff]
        %v330 = vld [vmem:[%s297 + $0x100] sm:$0xff]
        %v331 = vld [vmem:[%s297 + $0x108] sm:$0xff]
        %v332 = vld [vmem:[%s297 + $0x110] sm:$0xff]
        %v333 = vld [vmem:[%s297 + $0x118] sm:$0xff]
        %v334 = vld [vmem:[%s297 + $0x120] sm:$0x11]
        %v335 = vld [vmem:[%s297 + $0x128] sm:$0x11]
        %v336 = vld [vmem:[%s297 + $0x130] sm:$0x11]
        %v337 = vld [vmem:[%s297 + $0x138] sm:$0x11]
        %s338 = scalar_lea.vmem [#allocation3], 640
        %v339 = vld [vmem:[%s338] sm:$0xff]
        %v340 = vld [vmem:[%s338 + $0x8] sm:$0xff]
        %v341 = vld [vmem:[%s338 + $0x10] sm:$0xff]
        %v342 = vld [vmem:[%s338 + $0x18] sm:$0xff]
        %v343 = vld [vmem:[%s338 + $0x20] sm:$0xff]
        %v344 = vld [vmem:[%s338 + $0x28] sm:$0xff]
        %v345 = vld [vmem:[%s338 + $0x30] sm:$0xff]
        %v346 = vld [vmem:[%s338 + $0x38] sm:$0xff]
        %v347 = vld [vmem:[%s338 + $0x40] sm:$0xff]
        %v348 = vld [vmem:[%s338 + $0x48] sm:$0xff]
        %v349 = vld [vmem:[%s338 + $0x50] sm:$0xff]
        %v350 = vld [vmem:[%s338 + $0x58] sm:$0xff]
        %v351 = vld [vmem:[%s338 + $0x60] sm:$0xff]
        %v352 = vld [vmem:[%s338 + $0x68] sm:$0xff]
        %v353 = vld [vmem:[%s338 + $0x70] sm:$0xff]
        %v354 = vld [vmem:[%s338 + $0x78] sm:$0xff]
        %v355 = vld [vmem:[%s338 + $0x80] sm:$0xff]
        %v356 = vld [vmem:[%s338 + $0x88] sm:$0xff]
        %v357 = vld [vmem:[%s338 + $0x90] sm:$0xff]
        %v358 = vld [vmem:[%s338 + $0x98] sm:$0xff]
        %v359 = vld [vmem:[%s338 + $0xa0] sm:$0xff]
        %v360 = vld [vmem:[%s338 + $0xa8] sm:$0xff]
        %v361 = vld [vmem:[%s338 + $0xb0] sm:$0xff]
        %v362 = vld [vmem:[%s338 + $0xb8] sm:$0xff]
        %v363 = vld [vmem:[%s338 + $0xc0] sm:$0xff]
        %v364 = vld [vmem:[%s338 + $0xc8] sm:$0xff]
        %v365 = vld [vmem:[%s338 + $0xd0] sm:$0xff]
        %v366 = vld [vmem:[%s338 + $0xd8] sm:$0xff]
        %v367 = vld [vmem:[%s338 + $0xe0] sm:$0xff]
        %v368 = vld [vmem:[%s338 + $0xe8] sm:$0xff]
        %v369 = vld [vmem:[%s338 + $0xf0] sm:$0xff]
        %v370 = vld [vmem:[%s338 + $0xf8] sm:$0xff]
        %v371 = vld [vmem:[%s338 + $0x100] sm:$0xff]
        %v372 = vld [vmem:[%s338 + $0x108] sm:$0xff]
        %v373 = vld [vmem:[%s338 + $0x110] sm:$0xff]
        %v374 = vld [vmem:[%s338 + $0x118] sm:$0xff]
        %v375 = vld [vmem:[%s338 + $0x120] sm:$0x11]
        %v376 = vld [vmem:[%s338 + $0x128] sm:$0x11]
        %v377 = vld [vmem:[%s338 + $0x130] sm:$0x11]
        %v378 = vld [vmem:[%s338 + $0x138] sm:$0x11]
        %v379 = vld [vmem:[#allocation5] sm:$0xff]
        %v380 = vld [vmem:[#allocation5 + $0x8] sm:$0xff]
        %v381 = vld [vmem:[#allocation5 + $0x10] sm:$0xff]
        %v382 = vld [vmem:[#allocation5 + $0x18] sm:$0xff]
        %v383 = vld [vmem:[#allocation5 + $0x20] sm:$0xff]
        %v384 = vld [vmem:[#allocation5 + $0x28] sm:$0xff]
        %v385 = vld [vmem:[#allocation5 + $0x30] sm:$0xff]
        %v386 = vld [vmem:[#allocation5 + $0x38] sm:$0xff]
        %v387 = vld [vmem:[#allocation5 + $0x40] sm:$0xff]
        %v388 = vld [vmem:[#allocation5 + $0x48] sm:$0xff]
        %v389 = vld [vmem:[#allocation5 + $0x50] sm:$0xff]
        %v390 = vld [vmem:[#allocation5 + $0x58] sm:$0xff]
        %v391 = vld [vmem:[#allocation5 + $0x60] sm:$0xff]
        %v392 = vld [vmem:[#allocation5 + $0x68] sm:$0xff]
        %v393 = vld [vmem:[#allocation5 + $0x70] sm:$0xff]
        %v394 = vld [vmem:[#allocation5 + $0x78] sm:$0xff]
        %v395 = vld [vmem:[#allocation5 + $0x80] sm:$0xff]
        %v396 = vld [vmem:[#allocation5 + $0x88] sm:$0xff]
        %v397 = vld [vmem:[#allocation5 + $0x90] sm:$0xff]
        %v398 = vld [vmem:[#allocation5 + $0x98] sm:$0xff]
        %v399 = vld [vmem:[#allocation5 + $0xa0] sm:$0xff]
        %v400 = vld [vmem:[#allocation5 + $0xa8] sm:$0xff]
        %v401 = vld [vmem:[#allocation5 + $0xb0] sm:$0xff]
        %v402 = vld [vmem:[#allocation5 + $0xb8] sm:$0xff]
        %v403 = vld [vmem:[#allocation5 + $0xc0] sm:$0xff]
        %v404 = vld [vmem:[#allocation5 + $0xc8] sm:$0xff]
        %v405 = vld [vmem:[#allocation5 + $0xd0] sm:$0xff]
        %v406 = vld [vmem:[#allocation5 + $0xd8] sm:$0xff]
        %v407 = vld [vmem:[#allocation5 + $0xe0] sm:$0xff]
        %v408 = vld [vmem:[#allocation5 + $0xe8] sm:$0xff]
        %v409 = vld [vmem:[#allocation5 + $0xf0] sm:$0xff]
        %v410 = vld [vmem:[#allocation5 + $0xf8] sm:$0xff]
        %v411 = vld [vmem:[#allocation5 + $0x100] sm:$0xff]
        %v412 = vld [vmem:[#allocation5 + $0x108] sm:$0xff]
        %v413 = vld [vmem:[#allocation5 + $0x110] sm:$0xff]
        %v414 = vld [vmem:[#allocation5 + $0x118] sm:$0xff]
        %v415 = vld [vmem:[#allocation5 + $0x120] sm:$0xff]
        %v416 = vld [vmem:[#allocation5 + $0x128] sm:$0xff]
        %v417 = vld [vmem:[#allocation5 + $0x130] sm:$0xff]
        %v418 = vld [vmem:[#allocation5 + $0x138] sm:$0xff]
        %v419 = vld [vmem:[#allocation5 + $0x140] sm:$0xff]
        %v420 = vld [vmem:[#allocation5 + $0x148] sm:$0xff]
        %v421 = vld [vmem:[#allocation5 + $0x150] sm:$0xff]
        %v422 = vld [vmem:[#allocation5 + $0x158] sm:$0xff]
        %v423 = vld [vmem:[#allocation5 + $0x160] sm:$0xff]
        %v424 = vld [vmem:[#allocation5 + $0x168] sm:$0xff]
        %v425 = vld [vmem:[#allocation5 + $0x170] sm:$0xff]
        %v426 = vld [vmem:[#allocation5 + $0x178] sm:$0xff]
        %v427 = vld [vmem:[#allocation5 + $0x180] sm:$0xff]
        %v428 = vld [vmem:[#allocation5 + $0x188] sm:$0xff]
        %v429 = vld [vmem:[#allocation5 + $0x190] sm:$0xff]
        %v430 = vld [vmem:[#allocation5 + $0x198] sm:$0xff]
        %v431 = vld [vmem:[#allocation5 + $0x1a0] sm:$0xff]
        %v432 = vld [vmem:[#allocation5 + $0x1a8] sm:$0xff]
        %v433 = vld [vmem:[#allocation5 + $0x1b0] sm:$0xff]
        %v434 = vld [vmem:[#allocation5 + $0x1b8] sm:$0xff]
        %v435 = vld [vmem:[#allocation5 + $0x1c0] sm:$0xff]
        %v436 = vld [vmem:[#allocation5 + $0x1c8] sm:$0xff]
        %v437 = vld [vmem:[#allocation5 + $0x1d0] sm:$0xff]
        %v438 = vld [vmem:[#allocation5 + $0x1d8] sm:$0xff]
        %v439 = vld [vmem:[#allocation5 + $0x1e0] sm:$0xff]
        %v440 = vld [vmem:[#allocation5 + $0x1e8] sm:$0xff]
        %v441 = vld [vmem:[#allocation5 + $0x1f0] sm:$0xff]
        %v442 = vld [vmem:[#allocation5 + $0x1f8] sm:$0xff]
        %v443 = vld [vmem:[#allocation5 + $0x200] sm:$0xff]
        %v444 = vld [vmem:[#allocation5 + $0x208] sm:$0xff]
        %v445 = vld [vmem:[#allocation5 + $0x210] sm:$0xff]
        %v446 = vld [vmem:[#allocation5 + $0x218] sm:$0xff]
        %v447 = vld [vmem:[#allocation5 + $0x220] sm:$0xff]
        %v448 = vld [vmem:[#allocation5 + $0x228] sm:$0xff]
        %v449 = vld [vmem:[#allocation5 + $0x230] sm:$0xff]
        %v450 = vld [vmem:[#allocation5 + $0x238] sm:$0xff]
        %v451 = vld [vmem:[#allocation5 + $0x240] sm:$0xff]
        %v452 = vld [vmem:[#allocation5 + $0x248] sm:$0xff]
        %v453 = vld [vmem:[#allocation5 + $0x250] sm:$0xff]
        %v454 = vld [vmem:[#allocation5 + $0x258] sm:$0xff]
        %v455 = vld [vmem:[#allocation5 + $0x260] sm:$0xff]
        %v456 = vld [vmem:[#allocation5 + $0x268] sm:$0xff]
        %v457 = vld [vmem:[#allocation5 + $0x270] sm:$0xff]
        %v458 = vld [vmem:[#allocation5 + $0x278] sm:$0xff]
        %v459 = vld [vmem:[#allocation5 + $0x280] sm:$0xff]
        %v460 = vld [vmem:[#allocation5 + $0x288] sm:$0xff]
        %v461 = vld [vmem:[#allocation5 + $0x290] sm:$0xff]
        %v462 = vld [vmem:[#allocation5 + $0x298] sm:$0xff]
        %v463 = vld [vmem:[#allocation5 + $0x2a0] sm:$0xff]
        %v464 = vld [vmem:[#allocation5 + $0x2a8] sm:$0xff]
        %v465 = vld [vmem:[#allocation5 + $0x2b0] sm:$0xff]
        %v466 = vld [vmem:[#allocation5 + $0x2b8] sm:$0xff]
        %v467 = vld [vmem:[#allocation5 + $0x2c0] sm:$0xff]
        %v468 = vld [vmem:[#allocation5 + $0x2c8] sm:$0xff]
        %v469 = vld [vmem:[#allocation5 + $0x2d0] sm:$0xff]
        %v470 = vld [vmem:[#allocation5 + $0x2d8] sm:$0xff]
        %v471 = vld [vmem:[#allocation5 + $0x2e0] sm:$0xff]
        %v472 = vld [vmem:[#allocation5 + $0x2e8] sm:$0xff]
        %v473 = vld [vmem:[#allocation5 + $0x2f0] sm:$0xff]
        %v474 = vld [vmem:[#allocation5 + $0x2f8] sm:$0xff]
        %v475 = vld [vmem:[#allocation5 + $0x300] sm:$0xff]
        %v476 = vld [vmem:[#allocation5 + $0x308] sm:$0xff]
        %v477 = vld [vmem:[#allocation5 + $0x310] sm:$0xff]
        %v478 = vld [vmem:[#allocation5 + $0x318] sm:$0xff]
        %v479 = vld [vmem:[#allocation5 + $0x320] sm:$0xff]
        %v480 = vld [vmem:[#allocation5 + $0x328] sm:$0xff]
        %v481 = vld [vmem:[#allocation5 + $0x330] sm:$0xff]
        %v482 = vld [vmem:[#allocation5 + $0x338] sm:$0xff]
        %v483 = vld [vmem:[#allocation5 + $0x340] sm:$0xff]
        %v484 = vld [vmem:[#allocation5 + $0x348] sm:$0xff]
        %v485 = vld [vmem:[#allocation5 + $0x350] sm:$0xff]
        %v486 = vld [vmem:[#allocation5 + $0x358] sm:$0xff]
        %v487 = vld [vmem:[#allocation5 + $0x360] sm:$0xff]
        %v488 = vld [vmem:[#allocation5 + $0x368] sm:$0xff]
        %v489 = vld [vmem:[#allocation5 + $0x370] sm:$0xff]
        %v490 = vld [vmem:[#allocation5 + $0x378] sm:$0xff]
        %v491 = vld [vmem:[#allocation5 + $0x380] sm:$0xff]
        %v492 = vld [vmem:[#allocation5 + $0x388] sm:$0xff]
        %v493 = vld [vmem:[#allocation5 + $0x390] sm:$0xff]
        %v494 = vld [vmem:[#allocation5 + $0x398] sm:$0xff]
        %v495 = vld [vmem:[#allocation5 + $0x3a0] sm:$0xff]
        %v496 = vld [vmem:[#allocation5 + $0x3a8] sm:$0xff]
        %v497 = vld [vmem:[#allocation5 + $0x3b0] sm:$0xff]
        %v498 = vld [vmem:[#allocation5 + $0x3b8] sm:$0xff]
        %v499 = vld [vmem:[#allocation5 + $0x3c0] sm:$0xff]
        %v500 = vld [vmem:[#allocation5 + $0x3c8] sm:$0xff]
        %v501 = vld [vmem:[#allocation5 + $0x3d0] sm:$0xff]
        %v502 = vld [vmem:[#allocation5 + $0x3d8] sm:$0xff]
        %v503 = vld [vmem:[#allocation5 + $0x3e0] sm:$0xff]
        %v504 = vld [vmem:[#allocation5 + $0x3e8] sm:$0xff]
        %v505 = vld [vmem:[#allocation5 + $0x3f0] sm:$0xff]
        %v506 = vld [vmem:[#allocation5 + $0x3f8] sm:$0xff]
        %v507 = vld [vmem:[%s3] sm:$0xff]
        %v508 = vld [vmem:[%s3 + $0x8] sm:$0xff]
        %v509 = vld [vmem:[%s3 + $0x10] sm:$0xff]
        %s510 = sld [smem:[#allocation2]]
        %v511 = vld [vmem:[%s250] sm:$0xf]
        %v512 = vld [vmem:[%s250 + $0x4] sm:$0xf]
        %v513 = vld [vmem:[%s250 + $0x8] sm:$0x1]
        %v517 = vunpack.c.l.b16 %v511
        %v518 = vunpack.c.l.b16 %v512
        %v519 = vunpack.c.l.b16 %v513
        %v520 = vpack.c.b16 %v518, %v517
        %v521 = vpack.c.b16 %v519, %v519
        %vm522 = vsmask.f32 7424
        %v524 = vshrl.u32 %v520, 16
        %v526 = vshll.u32 %v520, 16
        %v528 = vrot.slane %v526, 1
        %v529 = vor.u32 %v524, %v528
        %v531 = vshll.u32 %v521, 16
        %v533 = vrot.slane %v531, 1
        %v534 = vsel %vm522, %v529, %v533
        %v575 = vunpack.c.l.b16 %v298
        %v576 = vunpack.c.h.b16 %v298
        %v577 = vunpack.c.l.b16 %v299
        %v578 = vunpack.c.h.b16 %v299
        %v579 = vunpack.c.l.b16 %v300
        %v580 = vunpack.c.h.b16 %v300
        %v581 = vunpack.c.l.b16 %v301
        %v582 = vunpack.c.h.b16 %v301
        %v583 = vunpack.c.l.b16 %v302
        %v584 = vunpack.c.h.b16 %v302
        %v585 = vunpack.c.l.b16 %v303
        %v586 = vunpack.c.h.b16 %v303
        %v587 = vunpack.c.l.b16 %v304
        %v588 = vunpack.c.h.b16 %v304
        %v589 = vunpack.c.l.b16 %v305
        %v590 = vunpack.c.h.b16 %v305
        %v591 = vunpack.c.l.b16 %v306
        %v592 = vunpack.c.h.b16 %v306
        %v593 = vunpack.c.l.b16 %v307
        %v594 = vunpack.c.h.b16 %v307
        %v595 = vunpack.c.l.b16 %v308
        %v596 = vunpack.c.h.b16 %v308
        %v597 = vunpack.c.l.b16 %v309
        %v598 = vunpack.c.h.b16 %v309
        %v599 = vunpack.c.l.b16 %v310
        %v600 = vunpack.c.h.b16 %v310
        %v601 = vunpack.c.l.b16 %v311
        %v602 = vunpack.c.h.b16 %v311
        %v603 = vunpack.c.l.b16 %v312
        %v604 = vunpack.c.h.b16 %v312
        %v605 = vunpack.c.l.b16 %v313
        %v606 = vunpack.c.h.b16 %v313
        %v607 = vunpack.c.l.b16 %v314
        %v608 = vunpack.c.h.b16 %v314
        %v609 = vunpack.c.l.b16 %v315
        %v610 = vunpack.c.h.b16 %v315
        %v611 = vunpack.c.l.b16 %v316
        %v612 = vunpack.c.h.b16 %v316
        %v613 = vunpack.c.l.b16 %v317
        %v614 = vunpack.c.h.b16 %v317
        %v615 = vunpack.c.l.b16 %v318
        %v616 = vunpack.c.h.b16 %v318
        %v617 = vunpack.c.l.b16 %v319
        %v618 = vunpack.c.h.b16 %v319
        %v619 = vunpack.c.l.b16 %v320
        %v620 = vunpack.c.h.b16 %v320
        %v621 = vunpack.c.l.b16 %v321
        %v622 = vunpack.c.h.b16 %v321
        %v623 = vunpack.c.l.b16 %v322
        %v624 = vunpack.c.h.b16 %v322
        %v625 = vunpack.c.l.b16 %v323
        %v626 = vunpack.c.h.b16 %v323
        %v627 = vunpack.c.l.b16 %v324
        %v628 = vunpack.c.h.b16 %v324
        %v629 = vunpack.c.l.b16 %v325
        %v630 = vunpack.c.h.b16 %v325
        %v631 = vunpack.c.l.b16 %v326
        %v632 = vunpack.c.h.b16 %v326
        %v633 = vunpack.c.l.b16 %v327
        %v634 = vunpack.c.h.b16 %v327
        %v635 = vunpack.c.l.b16 %v328
        %v636 = vunpack.c.h.b16 %v328
        %v637 = vunpack.c.l.b16 %v329
        %v638 = vunpack.c.h.b16 %v329
        %v639 = vunpack.c.l.b16 %v330
        %v640 = vunpack.c.h.b16 %v330
        %v641 = vunpack.c.l.b16 %v331
        %v642 = vunpack.c.h.b16 %v331
        %v643 = vunpack.c.l.b16 %v332
        %v644 = vunpack.c.h.b16 %v332
        %v645 = vunpack.c.l.b16 %v333
        %v646 = vunpack.c.h.b16 %v333
        %v647 = vunpack.c.l.b16 %v334
        %v648 = vunpack.c.h.b16 %v334
        %v649 = vunpack.c.l.b16 %v335
        %v650 = vunpack.c.h.b16 %v335
        %v651 = vunpack.c.l.b16 %v336
        %v652 = vunpack.c.h.b16 %v336
        %v653 = vunpack.c.l.b16 %v337
        %v654 = vunpack.c.h.b16 %v337
        %v655 = vpack.c.b16 %v583, %v575
        %v656 = vpack.c.b16 %v584, %v576
        %v657 = vpack.c.b16 %v585, %v577
        %v658 = vpack.c.b16 %v586, %v578
        %v659 = vpack.c.b16 %v587, %v579
        %v660 = vpack.c.b16 %v588, %v580
        %v661 = vpack.c.b16 %v589, %v581
        %v662 = vpack.c.b16 %v590, %v582
        %v663 = vpack.c.b16 %v599, %v591
        %v664 = vpack.c.b16 %v600, %v592
        %v665 = vpack.c.b16 %v601, %v593
        %v666 = vpack.c.b16 %v602, %v594
        %v667 = vpack.c.b16 %v603, %v595
        %v668 = vpack.c.b16 %v604, %v596
        %v669 = vpack.c.b16 %v605, %v597
        %v670 = vpack.c.b16 %v606, %v598
        %v671 = vpack.c.b16 %v615, %v607
        %v672 = vpack.c.b16 %v616, %v608
        %v673 = vpack.c.b16 %v617, %v609
        %v674 = vpack.c.b16 %v618, %v610
        %v675 = vpack.c.b16 %v619, %v611
        %v676 = vpack.c.b16 %v620, %v612
        %v677 = vpack.c.b16 %v621, %v613
        %v678 = vpack.c.b16 %v622, %v614
        %v679 = vpack.c.b16 %v631, %v623
        %v680 = vpack.c.b16 %v632, %v624
        %v681 = vpack.c.b16 %v633, %v625
        %v682 = vpack.c.b16 %v634, %v626
        %v683 = vpack.c.b16 %v635, %v627
        %v684 = vpack.c.b16 %v636, %v628
        %v685 = vpack.c.b16 %v637, %v629
        %v686 = vpack.c.b16 %v638, %v630
        %v687 = vpack.c.b16 %v647, %v639
        %v688 = vpack.c.b16 %v648, %v640
        %v689 = vpack.c.b16 %v649, %v641
        %v690 = vpack.c.b16 %v650, %v642
        %v691 = vpack.c.b16 %v651, %v643
        %v692 = vpack.c.b16 %v652, %v644
        %v693 = vpack.c.b16 %v653, %v645
        %v694 = vpack.c.b16 %v654, %v646
        %vm727 = vcmask 596992
        %v729 = vsel %vm727, %v534, 0
        %vm731 = vcmask 1043456
        %vm732 = vcmask 1044480
        %v733 = vsel %vm731, 4294967295, 65535
        %v734 = vsel %vm732, %v733, 0
        %v736 = vand.u32 %v687, %v734
        %v739 = vand.u32 %v688, %v734
        %v742 = vand.u32 %v689, %v734
        %v745 = vand.u32 %v690, %v734
        %v748 = vand.u32 %v691, %v734
        %v751 = vand.u32 %v692, %v734
        %v754 = vand.u32 %v693, %v734
        %v757 = vand.u32 %v694, %v734
        %759 = vmatprep.subr.bf16.mxu0 %v656
        %760 = vmatpush1.bf16.msra.mxu0 %v655
        %761 = vmatprep.subr.bf16.mxu0 %v664
        %762 = vmatpush1.bf16.msra.mxu0 %v663
        %763 = vmatprep.subr.bf16.mxu0 %v672
        %764 = vmatpush1.bf16.msra.mxu0 %v671
        %765 = vmatprep.subr.bf16.mxu0 %v680
        %766 = vmatpush1.bf16.msra.mxu0 %v679
        %767 = vmatprep.subr.bf16.mxu0 %v739
        %768 = vmatpush1.bf16.msra.mxu0 %v736
        %769 = vmatprep.subr.bf16.mxu0 0
        %770 = vmatpush1.bf16.msra.mxu0 0
        %771 = vmatprep.subr.bf16.mxu0 0
        %772 = vmatpush1.bf16.msra.mxu0 0
        %773 = vmatprep.subr.bf16.mxu0 0
        %774 = vmatpush1.bf16.msra.mxu0 0
        %775 = vmatprep.subr.bf16.mxu0 0
        %776 = vmatpush1.bf16.msra.mxu0 0
        %777 = vmatprep.subr.bf16.mxu0 0
        %778 = vmatpush1.bf16.msra.mxu0 0
        %779 = vmatprep.subr.bf16.mxu0 0
        %780 = vmatpush1.bf16.msra.mxu0 0
        %781 = vmatprep.subr.bf16.mxu0 0
        %782 = vmatpush1.bf16.msra.mxu0 0
        %783 = vmatprep.subr.bf16.mxu0 0
        %784 = vmatpush1.bf16.msra.mxu0 0
        %785 = vmatprep.subr.bf16.mxu0 0
        %786 = vmatpush1.bf16.msra.mxu0 0
        %787 = vmatprep.subr.bf16.mxu0 0
        %788 = vmatpush1.bf16.msra.mxu0 0
        %789 = vmatprep.subr.bf16.mxu0 0
        %790 = vmatpush1.bf16.msra.mxu0 0
        %791 = vmatprep.mubr.bf16.mxu0 0
        %792 = vmatmul.mubr.bf16.gmra.mrb[0].mxu0 %v729
        %v793 = vpop.f32.mrb[0].mxu0
        %v794 = vadd.f32 0.0, %v793
        %v795 = vpop.f32.mrb[0].mxu0
        %v796 = vadd.f32 0.0, %v795
        %v797 = vpop.f32.mrb[0].mxu0
        %v798 = vadd.f32 0.0, %v797
        %v799 = vpop.f32.mrb[0].mxu0
        %v800 = vadd.f32 0.0, %v799
        %801 = vdwg.mxu0
        %802 = vmatprep.subr.bf16.mxu0 %v658
        %803 = vmatpush1.bf16.msra.mxu0 %v657
        %804 = vmatprep.subr.bf16.mxu0 %v666
        %805 = vmatpush1.bf16.msra.mxu0 %v665
        %806 = vmatprep.subr.bf16.mxu0 %v674
        %807 = vmatpush1.bf16.msra.mxu0 %v673
        %808 = vmatprep.subr.bf16.mxu0 %v682
        %809 = vmatpush1.bf16.msra.mxu0 %v681
        %810 = vmatprep.subr.bf16.mxu0 %v745
        %811 = vmatpush1.bf16.msra.mxu0 %v742
        %812 = vmatprep.subr.bf16.mxu0 0
        %813 = vmatpush1.bf16.msra.mxu0 0
        %814 = vmatprep.subr.bf16.mxu0 0
        %815 = vmatpush1.bf16.msra.mxu0 0
        %816 = vmatprep.subr.bf16.mxu0 0
        %817 = vmatpush1.bf16.msra.mxu0 0
        %818 = vmatprep.subr.bf16.mxu0 0
        %819 = vmatpush1.bf16.msra.mxu0 0
        %820 = vmatprep.subr.bf16.mxu0 0
        %821 = vmatpush1.bf16.msra.mxu0 0
        %822 = vmatprep.subr.bf16.mxu0 0
        %823 = vmatpush1.bf16.msra.mxu0 0
        %824 = vmatprep.subr.bf16.mxu0 0
        %825 = vmatpush1.bf16.msra.mxu0 0
        %826 = vmatprep.subr.bf16.mxu0 0
        %827 = vmatpush1.bf16.msra.mxu0 0
        %828 = vmatprep.subr.bf16.mxu0 0
        %829 = vmatpush1.bf16.msra.mxu0 0
        %830 = vmatprep.subr.bf16.mxu0 0
        %831 = vmatpush1.bf16.msra.mxu0 0
        %832 = vmatprep.subr.bf16.mxu0 0
        %833 = vmatpush1.bf16.msra.mxu0 0
        %834 = vmatprep.mubr.bf16.mxu0 0
        %835 = vmatmul.mubr.bf16.gmra.mrb[0].mxu0 %v729
        %v836 = vpop.f32.mrb[0].mxu0
        %v837 = vadd.f32 0.0, %v836
        %v838 = vpop.f32.mrb[0].mxu0
        %v839 = vadd.f32 0.0, %v838
        %v840 = vpop.f32.mrb[0].mxu0
        %v841 = vadd.f32 0.0, %v840
        %v842 = vpop.f32.mrb[0].mxu0
        %v843 = vadd.f32 0.0, %v842
        %844 = vdwg.mxu0
        %845 = vmatprep.subr.bf16.mxu0 %v660
        %846 = vmatpush1.bf16.msra.mxu0 %v659
        %847 = vmatprep.subr.bf16.mxu0 %v668
        %848 = vmatpush1.bf16.msra.mxu0 %v667
        %849 = vmatprep.subr.bf16.mxu0 %v676
        %850 = vmatpush1.bf16.msra.mxu0 %v675
        %851 = vmatprep.subr.bf16.mxu0 %v684
        %852 = vmatpush1.bf16.msra.mxu0 %v683
        %853 = vmatprep.subr.bf16.mxu0 %v751
        %854 = vmatpush1.bf16.msra.mxu0 %v748
        %855 = vmatprep.subr.bf16.mxu0 0
        %856 = vmatpush1.bf16.msra.mxu0 0
        %857 = vmatprep.subr.bf16.mxu0 0
        %858 = vmatpush1.bf16.msra.mxu0 0
        %859 = vmatprep.subr.bf16.mxu0 0
        %860 = vmatpush1.bf16.msra.mxu0 0
        %861 = vmatprep.subr.bf16.mxu0 0
        %862 = vmatpush1.bf16.msra.mxu0 0
        %863 = vmatprep.subr.bf16.mxu0 0
        %864 = vmatpush1.bf16.msra.mxu0 0
        %865 = vmatprep.subr.bf16.mxu0 0
        %866 = vmatpush1.bf16.msra.mxu0 0
        %867 = vmatprep.subr.bf16.mxu0 0
        %868 = vmatpush1.bf16.msra.mxu0 0
        %869 = vmatprep.subr.bf16.mxu0 0
        %870 = vmatpush1.bf16.msra.mxu0 0
        %871 = vmatprep.subr.bf16.mxu0 0
        %872 = vmatpush1.bf16.msra.mxu0 0
        %873 = vmatprep.subr.bf16.mxu0 0
        %874 = vmatpush1.bf16.msra.mxu0 0
        %875 = vmatprep.subr.bf16.mxu0 0
        %876 = vmatpush1.bf16.msra.mxu0 0
        %877 = vmatprep.mubr.bf16.mxu0 0
        %878 = vmatmul.mubr.bf16.gmra.mrb[0].mxu0 %v729
        %v879 = vpop.f32.mrb[0].mxu0
        %v880 = vadd.f32 0.0, %v879
        %v881 = vpop.f32.mrb[0].mxu0
        %v882 = vadd.f32 0.0, %v881
        %v883 = vpop.f32.mrb[0].mxu0
        %v884 = vadd.f32 0.0, %v883
        %v885 = vpop.f32.mrb[0].mxu0
        %v886 = vadd.f32 0.0, %v885
        %887 = vdwg.mxu0
        %888 = vmatprep.subr.bf16.mxu0 %v662
        %889 = vmatpush1.bf16.msra.mxu0 %v661
        %890 = vmatprep.subr.bf16.mxu0 %v670
        %891 = vmatpush1.bf16.msra.mxu0 %v669
        %892 = vmatprep.subr.bf16.mxu0 %v678
        %893 = vmatpush1.bf16.msra.mxu0 %v677
        %894 = vmatprep.subr.bf16.mxu0 %v686
        %895 = vmatpush1.bf16.msra.mxu0 %v685
        %896 = vmatprep.subr.bf16.mxu0 %v757
        %897 = vmatpush1.bf16.msra.mxu0 %v754
        %898 = vmatprep.subr.bf16.mxu0 0
        %899 = vmatpush1.bf16.msra.mxu0 0
        %900 = vmatprep.subr.bf16.mxu0 0
        %901 = vmatpush1.bf16.msra.mxu0 0
        %902 = vmatprep.subr.bf16.mxu0 0
        %903 = vmatpush1.bf16.msra.mxu0 0
        %904 = vmatprep.subr.bf16.mxu0 0
        %905 = vmatpush1.bf16.msra.mxu0 0
        %906 = vmatprep.subr.bf16.mxu0 0
        %907 = vmatpush1.bf16.msra.mxu0 0
        %908 = vmatprep.subr.bf16.mxu0 0
        %909 = vmatpush1.bf16.msra.mxu0 0
        %910 = vmatprep.subr.bf16.mxu0 0
        %911 = vmatpush1.bf16.msra.mxu0 0
        %912 = vmatprep.subr.bf16.mxu0 0
        %913 = vmatpush1.bf16.msra.mxu0 0
        %914 = vmatprep.subr.bf16.mxu0 0
        %915 = vmatpush1.bf16.msra.mxu0 0
        %916 = vmatprep.subr.bf16.mxu0 0
        %917 = vmatpush1.bf16.msra.mxu0 0
        %918 = vmatprep.subr.bf16.mxu0 0
        %919 = vmatpush1.bf16.msra.mxu0 0
        %920 = vmatprep.mubr.bf16.mxu0 0
        %921 = vmatmul.mubr.bf16.gmra.mrb[0].mxu0 %v729
        %v922 = vpop.f32.mrb[0].mxu0
        %v923 = vadd.f32 0.0, %v922
        %v924 = vpop.f32.mrb[0].mxu0
        %v925 = vadd.f32 0.0, %v924
        %v926 = vpop.f32.mrb[0].mxu0
        %v927 = vadd.f32 0.0, %v926
        %v928 = vpop.f32.mrb[0].mxu0
        %v929 = vadd.f32 0.0, %v928
        %930 = vdwg.mxu0
        %v971 = vunpack.c.l.b16 %v257
        %v972 = vunpack.c.h.b16 %v257
        %v973 = vunpack.c.l.b16 %v258
        %v974 = vunpack.c.h.b16 %v258
        %v975 = vunpack.c.l.b16 %v259
        %v976 = vunpack.c.h.b16 %v259
        %v977 = vunpack.c.l.b16 %v260
        %v978 = vunpack.c.h.b16 %v260
        %v979 = vunpack.c.l.b16 %v261
        %v980 = vunpack.c.h.b16 %v261
        %v981 = vunpack.c.l.b16 %v262
        %v982 = vunpack.c.h.b16 %v262
        %v983 = vunpack.c.l.b16 %v263
        %v984 = vunpack.c.h.b16 %v263
        %v985 = vunpack.c.l.b16 %v264
        %v986 = vunpack.c.h.b16 %v264
        %v987 = vunpack.c.l.b16 %v265
        %v988 = vunpack.c.h.b16 %v265
        %v989 = vunpack.c.l.b16 %v266
        %v990 = vunpack.c.h.b16 %v266
        %v991 = vunpack.c.l.b16 %v267
        %v992 = vunpack.c.h.b16 %v267
        %v993 = vunpack.c.l.b16 %v268
        %v994 = vunpack.c.h.b16 %v268
        %v995 = vunpack.c.l.b16 %v269
        %v996 = vunpack.c.h.b16 %v269
        %v997 = vunpack.c.l.b16 %v270
        %v998 = vunpack.c.h.b16 %v270
        %v999 = vunpack.c.l.b16 %v271
        %v1000 = vunpack.c.h.b16 %v271
        %v1001 = vunpack.c.l.b16 %v272
        %v1002 = vunpack.c.h.b16 %v272
        %v1003 = vunpack.c.l.b16 %v273
        %v1004 = vunpack.c.h.b16 %v273
        %v1005 = vunpack.c.l.b16 %v274
        %v1006 = vunpack.c.h.b16 %v274
        %v1007 = vunpack.c.l.b16 %v275
        %v1008 = vunpack.c.h.b16 %v275
        %v1009 = vunpack.c.l.b16 %v276
        %v1010 = vunpack.c.h.b16 %v276
        %v1011 = vunpack.c.l.b16 %v277
        %v1012 = vunpack.c.h.b16 %v277
        %v1013 = vunpack.c.l.b16 %v278
        %v1014 = vunpack.c.h.b16 %v278
        %v1015 = vunpack.c.l.b16 %v279
        %v1016 = vunpack.c.h.b16 %v279
        %v1017 = vunpack.c.l.b16 %v280
        %v1018 = vunpack.c.h.b16 %v280
        %v1019 = vunpack.c.l.b16 %v281
        %v1020 = vunpack.c.h.b16 %v281
        %v1021 = vunpack.c.l.b16 %v282
        %v1022 = vunpack.c.h.b16 %v282
        %v1023 = vunpack.c.l.b16 %v283
        %v1024 = vunpack.c.h.b16 %v283
        %v1025 = vunpack.c.l.b16 %v284
        %v1026 = vunpack.c.h.b16 %v284
        %v1027 = vunpack.c.l.b16 %v285
        %v1028 = vunpack.c.h.b16 %v285
        %v1029 = vunpack.c.l.b16 %v286
        %v1030 = vunpack.c.h.b16 %v286
        %v1031 = vunpack.c.l.b16 %v287
        %v1032 = vunpack.c.h.b16 %v287
        %v1033 = vunpack.c.l.b16 %v288
        %v1034 = vunpack.c.h.b16 %v288
        %v1035 = vunpack.c.l.b16 %v289
        %v1036 = vunpack.c.h.b16 %v289
        %v1037 = vunpack.c.l.b16 %v290
        %v1038 = vunpack.c.h.b16 %v290
        %v1039 = vunpack.c.l.b16 %v291
        %v1040 = vunpack.c.h.b16 %v291
        %v1041 = vunpack.c.l.b16 %v292
        %v1042 = vunpack.c.h.b16 %v292
        %v1043 = vunpack.c.l.b16 %v293
        %v1044 = vunpack.c.h.b16 %v293
        %v1045 = vunpack.c.l.b16 %v294
        %v1046 = vunpack.c.h.b16 %v294
        %v1047 = vunpack.c.l.b16 %v295
        %v1048 = vunpack.c.h.b16 %v295
        %v1049 = vunpack.c.l.b16 %v296
        %v1050 = vunpack.c.h.b16 %v296
        %v1051 = vpack.c.b16 %v979, %v971
        %v1052 = vpack.c.b16 %v980, %v972
        %v1053 = vpack.c.b16 %v981, %v973
        %v1054 = vpack.c.b16 %v982, %v974
        %v1055 = vpack.c.b16 %v983, %v975
        %v1056 = vpack.c.b16 %v984, %v976
        %v1057 = vpack.c.b16 %v985, %v977
        %v1058 = vpack.c.b16 %v986, %v978
        %v1059 = vpack.c.b16 %v995, %v987
        %v1060 = vpack.c.b16 %v996, %v988
        %v1061 = vpack.c.b16 %v997, %v989
        %v1062 = vpack.c.b16 %v998, %v990
        %v1063 = vpack.c.b16 %v999, %v991
        %v1064 = vpack.c.b16 %v1000, %v992
        %v1065 = vpack.c.b16 %v1001, %v993
        %v1066 = vpack.c.b16 %v1002, %v994
        %v1067 = vpack.c.b16 %v1011, %v1003
        %v1068 = vpack.c.b16 %v1012, %v1004
        %v1069 = vpack.c.b16 %v1013, %v1005
        %v1070 = vpack.c.b16 %v1014, %v1006
        %v1071 = vpack.c.b16 %v1015, %v1007
        %v1072 = vpack.c.b16 %v1016, %v1008
        %v1073 = vpack.c.b16 %v1017, %v1009
        %v1074 = vpack.c.b16 %v1018, %v1010
        %v1075 = vpack.c.b16 %v1027, %v1019
        %v1076 = vpack.c.b16 %v1028, %v1020
        %v1077 = vpack.c.b16 %v1029, %v1021
        %v1078 = vpack.c.b16 %v1030, %v1022
        %v1079 = vpack.c.b16 %v1031, %v1023
        %v1080 = vpack.c.b16 %v1032, %v1024
        %v1081 = vpack.c.b16 %v1033, %v1025
        %v1082 = vpack.c.b16 %v1034, %v1026
        %v1083 = vpack.c.b16 %v1043, %v1035
        %v1084 = vpack.c.b16 %v1044, %v1036
        %v1085 = vpack.c.b16 %v1045, %v1037
        %v1086 = vpack.c.b16 %v1046, %v1038
        %v1087 = vpack.c.b16 %v1047, %v1039
        %v1088 = vpack.c.b16 %v1048, %v1040
        %v1089 = vpack.c.b16 %v1049, %v1041
        %v1090 = vpack.c.b16 %v1050, %v1042
        %v1123 = vsel %vm727, %v520, 0
        %v1126 = vand.u32 %v1083, %v734
        %v1129 = vand.u32 %v1084, %v734
        %v1132 = vand.u32 %v1085, %v734
        %v1135 = vand.u32 %v1086, %v734
        %v1138 = vand.u32 %v1087, %v734
        %v1141 = vand.u32 %v1088, %v734
        %v1144 = vand.u32 %v1089, %v734
        %v1147 = vand.u32 %v1090, %v734
        %1149 = vmatprep.subr.bf16.mxu0 %v1052
        %1150 = vmatpush1.bf16.msra.mxu0 %v1051
        %1151 = vmatprep.subr.bf16.mxu0 %v1060
        %1152 = vmatpush1.bf16.msra.mxu0 %v1059
        %1153 = vmatprep.subr.bf16.mxu0 %v1068
        %1154 = vmatpush1.bf16.msra.mxu0 %v1067
        %1155 = vmatprep.subr.bf16.mxu0 %v1076
        %1156 = vmatpush1.bf16.msra.mxu0 %v1075
        %1157 = vmatprep.subr.bf16.mxu0 %v1129
        %1158 = vmatpush1.bf16.msra.mxu0 %v1126
        %1159 = vmatprep.subr.bf16.mxu0 0
        %1160 = vmatpush1.bf16.msra.mxu0 0
        %1161 = vmatprep.subr.bf16.mxu0 0
        %1162 = vmatpush1.bf16.msra.mxu0 0
        %1163 = vmatprep.subr.bf16.mxu0 0
        %1164 = vmatpush1.bf16.msra.mxu0 0
        %1165 = vmatprep.subr.bf16.mxu0 0
        %1166 = vmatpush1.bf16.msra.mxu0 0
        %1167 = vmatprep.subr.bf16.mxu0 0
        %1168 = vmatpush1.bf16.msra.mxu0 0
        %1169 = vmatprep.subr.bf16.mxu0 0
        %1170 = vmatpush1.bf16.msra.mxu0 0
        %1171 = vmatprep.subr.bf16.mxu0 0
        %1172 = vmatpush1.bf16.msra.mxu0 0
        %1173 = vmatprep.subr.bf16.mxu0 0
        %1174 = vmatpush1.bf16.msra.mxu0 0
        %1175 = vmatprep.subr.bf16.mxu0 0
        %1176 = vmatpush1.bf16.msra.mxu0 0
        %1177 = vmatprep.subr.bf16.mxu0 0
        %1178 = vmatpush1.bf16.msra.mxu0 0
        %1179 = vmatprep.subr.bf16.mxu0 0
        %1180 = vmatpush1.bf16.msra.mxu0 0
        %1181 = vmatprep.mubr.bf16.mxu0 0
        %1182 = vmatmul.mubr.bf16.gmra.mrb[0].mxu0 %v1123
        %v1183 = vpop.f32.mrb[0].mxu0
        %v1184 = vadd.f32 %v794, %v1183
        %v1185 = vpop.f32.mrb[0].mxu0
        %v1186 = vadd.f32 %v796, %v1185
        %v1187 = vpop.f32.mrb[0].mxu0
        %v1188 = vadd.f32 %v798, %v1187
        %v1189 = vpop.f32.mrb[0].mxu0
        %v1190 = vadd.f32 %v800, %v1189
        %1191 = vdwg.mxu0
        %1192 = vmatprep.subr.bf16.mxu0 %v1054
        %1193 = vmatpush1.bf16.msra.mxu0 %v1053
        %1194 = vmatprep.subr.bf16.mxu0 %v1062
        %1195 = vmatpush1.bf16.msra.mxu0 %v1061
        %1196 = vmatprep.subr.bf16.mxu0 %v1070
        %1197 = vmatpush1.bf16.msra.mxu0 %v1069
        %1198 = vmatprep.subr.bf16.mxu0 %v1078
        %1199 = vmatpush1.bf16.msra.mxu0 %v1077
        %1200 = vmatprep.subr.bf16.mxu0 %v1135
        %1201 = vmatpush1.bf16.msra.mxu0 %v1132
        %1202 = vmatprep.subr.bf16.mxu0 0
        %1203 = vmatpush1.bf16.msra.mxu0 0
        %1204 = vmatprep.subr.bf16.mxu0 0
        %1205 = vmatpush1.bf16.msra.mxu0 0
        %1206 = vmatprep.subr.bf16.mxu0 0
        %1207 = vmatpush1.bf16.msra.mxu0 0
        %1208 = vmatprep.subr.bf16.mxu0 0
        %1209 = vmatpush1.bf16.msra.mxu0 0
        %1210 = vmatprep.subr.bf16.mxu0 0
        %1211 = vmatpush1.bf16.msra.mxu0 0
        %1212 = vmatprep.subr.bf16.mxu0 0
        %1213 = vmatpush1.bf16.msra.mxu0 0
        %1214 = vmatprep.subr.bf16.mxu0 0
        %1215 = vmatpush1.bf16.msra.mxu0 0
        %1216 = vmatprep.subr.bf16.mxu0 0
        %1217 = vmatpush1.bf16.msra.mxu0 0
        %1218 = vmatprep.subr.bf16.mxu0 0
        %1219 = vmatpush1.bf16.msra.mxu0 0
        %1220 = vmatprep.subr.bf16.mxu0 0
        %1221 = vmatpush1.bf16.msra.mxu0 0
        %1222 = vmatprep.subr.bf16.mxu0 0
        %1223 = vmatpush1.bf16.msra.mxu0 0
        %1224 = vmatprep.mubr.bf16.mxu0 0
        %1225 = vmatmul.mubr.bf16.gmra.mrb[0].mxu0 %v1123
        %v1226 = vpop.f32.mrb[0].mxu0
        %v1227 = vadd.f32 %v837, %v1226
        %v1228 = vpop.f32.mrb[0].mxu0
        %v1229 = vadd.f32 %v839, %v1228
        %v1230 = vpop.f32.mrb[0].mxu0
        %v1231 = vadd.f32 %v841, %v1230
        %v1232 = vpop.f32.mrb[0].mxu0
        %v1233 = vadd.f32 %v843, %v1232
        %1234 = vdwg.mxu0
        %1235 = vmatprep.subr.bf16.mxu0 %v1056
        %1236 = vmatpush1.bf16.msra.mxu0 %v1055
        %1237 = vmatprep.subr.bf16.mxu0 %v1064
        %1238 = vmatpush1.bf16.msra.mxu0 %v1063
        %1239 = vmatprep.subr.bf16.mxu0 %v1072
        %1240 = vmatpush1.bf16.msra.mxu0 %v1071
        %1241 = vmatprep.subr.bf16.mxu0 %v1080
        %1242 = vmatpush1.bf16.msra.mxu0 %v1079
        %1243 = vmatprep.subr.bf16.mxu0 %v1141
        %1244 = vmatpush1.bf16.msra.mxu0 %v1138
        %1245 = vmatprep.subr.bf16.mxu0 0
        %1246 = vmatpush1.bf16.msra.mxu0 0
        %1247 = vmatprep.subr.bf16.mxu0 0
        %1248 = vmatpush1.bf16.msra.mxu0 0
        %1249 = vmatprep.subr.bf16.mxu0 0
        %1250 = vmatpush1.bf16.msra.mxu0 0
        %1251 = vmatprep.subr.bf16.mxu0 0
        %1252 = vmatpush1.bf16.msra.mxu0 0
        %1253 = vmatprep.subr.bf16.mxu0 0
        %1254 = vmatpush1.bf16.msra.mxu0 0
        %1255 = vmatprep.subr.bf16.mxu0 0
        %1256 = vmatpush1.bf16.msra.mxu0 0
        %1257 = vmatprep.subr.bf16.mxu0 0
        %1258 = vmatpush1.bf16.msra.mxu0 0
        %1259 = vmatprep.subr.bf16.mxu0 0
        %1260 = vmatpush1.bf16.msra.mxu0 0
        %1261 = vmatprep.subr.bf16.mxu0 0
        %1262 = vmatpush1.bf16.msra.mxu0 0
        %1263 = vmatprep.subr.bf16.mxu0 0
        %1264 = vmatpush1.bf16.msra.mxu0 0
        %1265 = vmatprep.subr.bf16.mxu0 0
        %1266 = vmatpush1.bf16.msra.mxu0 0
        %1267 = vmatprep.mubr.bf16.mxu0 0
        %1268 = vmatmul.mubr.bf16.gmra.mrb[0].mxu0 %v1123
        %v1269 = vpop.f32.mrb[0].mxu0
        %v1270 = vadd.f32 %v880, %v1269
        %v1271 = vpop.f32.mrb[0].mxu0
        %v1272 = vadd.f32 %v882, %v1271
        %v1273 = vpop.f32.mrb[0].mxu0
        %v1274 = vadd.f32 %v884, %v1273
        %v1275 = vpop.f32.mrb[0].mxu0
        %v1276 = vadd.f32 %v886, %v1275
        %1277 = vdwg.mxu0
        %1278 = vmatprep.subr.bf16.mxu0 %v1058
        %1279 = vmatpush1.bf16.msra.mxu0 %v1057
        %1280 = vmatprep.subr.bf16.mxu0 %v1066
        %1281 = vmatpush1.bf16.msra.mxu0 %v1065
        %1282 = vmatprep.subr.bf16.mxu0 %v1074
        %1283 = vmatpush1.bf16.msra.mxu0 %v1073
        %1284 = vmatprep.subr.bf16.mxu0 %v1082
        %1285 = vmatpush1.bf16.msra.mxu0 %v1081
        %1286 = vmatprep.subr.bf16.mxu0 %v1147
        %1287 = vmatpush1.bf16.msra.mxu0 %v1144
        %1288 = vmatprep.subr.bf16.mxu0 0
        %1289 = vmatpush1.bf16.msra.mxu0 0
        %1290 = vmatprep.subr.bf16.mxu0 0
        %1291 = vmatpush1.bf16.msra.mxu0 0
        %1292 = vmatprep.subr.bf16.mxu0 0
        %1293 = vmatpush1.bf16.msra.mxu0 0
        %1294 = vmatprep.subr.bf16.mxu0 0
        %1295 = vmatpush1.bf16.msra.mxu0 0
        %1296 = vmatprep.subr.bf16.mxu0 0
        %1297 = vmatpush1.bf16.msra.mxu0 0
        %1298 = vmatprep.subr.bf16.mxu0 0
        %1299 = vmatpush1.bf16.msra.mxu0 0
        %1300 = vmatprep.subr.bf16.mxu0 0
        %1301 = vmatpush1.bf16.msra.mxu0 0
        %1302 = vmatprep.subr.bf16.mxu0 0
        %1303 = vmatpush1.bf16.msra.mxu0 0
        %1304 = vmatprep.subr.bf16.mxu0 0
        %1305 = vmatpush1.bf16.msra.mxu0 0
        %1306 = vmatprep.subr.bf16.mxu0 0
        %1307 = vmatpush1.bf16.msra.mxu0 0
        %1308 = vmatprep.subr.bf16.mxu0 0
        %1309 = vmatpush1.bf16.msra.mxu0 0
        %1310 = vmatprep.mubr.bf16.mxu0 0
        %1311 = vmatmul.mubr.bf16.gmra.mrb[0].mxu0 %v1123
        %v1312 = vpop.f32.mrb[0].mxu0
        %v1313 = vadd.f32 %v923, %v1312
        %v1314 = vpop.f32.mrb[0].mxu0
        %v1315 = vadd.f32 %v925, %v1314
        %v1316 = vpop.f32.mrb[0].mxu0
        %v1317 = vadd.f32 %v927, %v1316
        %v1318 = vpop.f32.mrb[0].mxu0
        %v1319 = vadd.f32 %v929, %v1318
        %1320 = vdwg.mxu0
        %vm1321 = vcmask 1046528
        %v1322 = vrot.slane %v520, 1
        %v1323 = vrot.slane %v521, 1
        %v1324 = vsel %vm1321, %v1322, %v1323
        %v1365 = vunpack.c.l.b16 %v339
        %v1366 = vunpack.c.h.b16 %v339
        %v1367 = vunpack.c.l.b16 %v340
        %v1368 = vunpack.c.h.b16 %v340
        %v1369 = vunpack.c.l.b16 %v341
        %v1370 = vunpack.c.h.b16 %v341
        %v1371 = vunpack.c.l.b16 %v342
        %v1372 = vunpack.c.h.b16 %v342
        %v1373 = vunpack.c.l.b16 %v343
        %v1374 = vunpack.c.h.b16 %v343
        %v1375 = vunpack.c.l.b16 %v344
        %v1376 = vunpack.c.h.b16 %v344
        %v1377 = vunpack.c.l.b16 %v345
        %v1378 = vunpack.c.h.b16 %v345
        %v1379 = vunpack.c.l.b16 %v346
        %v1380 = vunpack.c.h.b16 %v346
        %v1381 = vunpack.c.l.b16 %v347
        %v1382 = vunpack.c.h.b16 %v347
        %v1383 = vunpack.c.l.b16 %v348
        %v1384 = vunpack.c.h.b16 %v348
        %v1385 = vunpack.c.l.b16 %v349
        %v1386 = vunpack.c.h.b16 %v349
        %v1387 = vunpack.c.l.b16 %v350
        %v1388 = vunpack.c.h.b16 %v350
        %v1389 = vunpack.c.l.b16 %v351
        %v1390 = vunpack.c.h.b16 %v351
        %v1391 = vunpack.c.l.b16 %v352
        %v1392 = vunpack.c.h.b16 %v352
        %v1393 = vunpack.c.l.b16 %v353
        %v1394 = vunpack.c.h.b16 %v353
        %v1395 = vunpack.c.l.b16 %v354
        %v1396 = vunpack.c.h.b16 %v354
        %v1397 = vunpack.c.l.b16 %v355
        %v1398 = vunpack.c.h.b16 %v355
        %v1399 = vunpack.c.l.b16 %v356
        %v1400 = vunpack.c.h.b16 %v356
        %v1401 = vunpack.c.l.b16 %v357
        %v1402 = vunpack.c.h.b16 %v357
        %v1403 = vunpack.c.l.b16 %v358
        %v1404 = vunpack.c.h.b16 %v358
        %v1405 = vunpack.c.l.b16 %v359
        %v1406 = vunpack.c.h.b16 %v359
        %v1407 = vunpack.c.l.b16 %v360
        %v1408 = vunpack.c.h.b16 %v360
        %v1409 = vunpack.c.l.b16 %v361
        %v1410 = vunpack.c.h.b16 %v361
        %v1411 = vunpack.c.l.b16 %v362
        %v1412 = vunpack.c.h.b16 %v362
        %v1413 = vunpack.c.l.b16 %v363
        %v1414 = vunpack.c.h.b16 %v363
        %v1415 = vunpack.c.l.b16 %v364
        %v1416 = vunpack.c.h.b16 %v364
        %v1417 = vunpack.c.l.b16 %v365
        %v1418 = vunpack.c.h.b16 %v365
        %v1419 = vunpack.c.l.b16 %v366
        %v1420 = vunpack.c.h.b16 %v366
        %v1421 = vunpack.c.l.b16 %v367
        %v1422 = vunpack.c.h.b16 %v367
        %v1423 = vunpack.c.l.b16 %v368
        %v1424 = vunpack.c.h.b16 %v368
        %v1425 = vunpack.c.l.b16 %v369
        %v1426 = vunpack.c.h.b16 %v369
        %v1427 = vunpack.c.l.b16 %v370
        %v1428 = vunpack.c.h.b16 %v370
        %v1429 = vunpack.c.l.b16 %v371
        %v1430 = vunpack.c.h.b16 %v371
        %v1431 = vunpack.c.l.b16 %v372
        %v1432 = vunpack.c.h.b16 %v372
        %v1433 = vunpack.c.l.b16 %v373
        %v1434 = vunpack.c.h.b16 %v373
        %v1435 = vunpack.c.l.b16 %v374
        %v1436 = vunpack.c.h.b16 %v374
        %v1437 = vunpack.c.l.b16 %v375
        %v1438 = vunpack.c.h.b16 %v375
        %v1439 = vunpack.c.l.b16 %v376
        %v1440 = vunpack.c.h.b16 %v376
        %v1441 = vunpack.c.l.b16 %v377
        %v1442 = vunpack.c.h.b16 %v377
        %v1443 = vunpack.c.l.b16 %v378
        %v1444 = vunpack.c.h.b16 %v378
        %v1445 = vpack.c.b16 %v1373, %v1365
        %v1446 = vpack.c.b16 %v1374, %v1366
        %v1447 = vpack.c.b16 %v1375, %v1367
        %v1448 = vpack.c.b16 %v1376, %v1368
        %v1449 = vpack.c.b16 %v1377, %v1369
        %v1450 = vpack.c.b16 %v1378, %v1370
        %v1451 = vpack.c.b16 %v1379, %v1371
        %v1452 = vpack.c.b16 %v1380, %v1372
        %v1453 = vpack.c.b16 %v1389, %v1381
        %v1454 = vpack.c.b16 %v1390, %v1382
        %v1455 = vpack.c.b16 %v1391, %v1383
        %v1456 = vpack.c.b16 %v1392, %v1384
        %v1457 = vpack.c.b16 %v1393, %v1385
        %v1458 = vpack.c.b16 %v1394, %v1386
        %v1459 = vpack.c.b16 %v1395, %v1387
        %v1460 = vpack.c.b16 %v1396, %v1388
        %v1461 = vpack.c.b16 %v1405, %v1397
        %v1462 = vpack.c.b16 %v1406, %v1398
        %v1463 = vpack.c.b16 %v1407, %v1399
        %v1464 = vpack.c.b16 %v1408, %v1400
        %v1465 = vpack.c.b16 %v1409, %v1401
        %v1466 = vpack.c.b16 %v1410, %v1402
        %v1467 = vpack.c.b16 %v1411, %v1403
        %v1468 = vpack.c.b16 %v1412, %v1404
        %v1469 = vpack.c.b16 %v1421, %v1413
        %v1470 = vpack.c.b16 %v1422, %v1414
        %v1471 = vpack.c.b16 %v1423, %v1415
        %v1472 = vpack.c.b16 %v1424, %v1416
        %v1473 = vpack.c.b16 %v1425, %v1417
        %v1474 = vpack.c.b16 %v1426, %v1418
        %v1475 = vpack.c.b16 %v1427, %v1419
        %v1476 = vpack.c.b16 %v1428, %v1420
        %v1477 = vpack.c.b16 %v1437, %v1429
        %v1478 = vpack.c.b16 %v1438, %v1430
        %v1479 = vpack.c.b16 %v1439, %v1431
        %v1480 = vpack.c.b16 %v1440, %v1432
        %v1481 = vpack.c.b16 %v1441, %v1433
        %v1482 = vpack.c.b16 %v1442, %v1434
        %v1483 = vpack.c.b16 %v1443, %v1435
        %v1484 = vpack.c.b16 %v1444, %v1436
        %v1518 = vsel %vm727, %v1324, 0
        %v1521 = vand.u32 %v1477, %v734
        %v1524 = vand.u32 %v1478, %v734
        %v1527 = vand.u32 %v1479, %v734
        %v1530 = vand.u32 %v1480, %v734
        %v1533 = vand.u32 %v1481, %v734
        %v1536 = vand.u32 %v1482, %v734
        %v1539 = vand.u32 %v1483, %v734
        %v1542 = vand.u32 %v1484, %v734
        %1544 = vmatprep.subr.bf16.mxu0 %v1446
        %1545 = vmatpush1.bf16.msra.mxu0 %v1445
        %1546 = vmatprep.subr.bf16.mxu0 %v1454
        %1547 = vmatpush1.bf16.msra.mxu0 %v1453
        %1548 = vmatprep.subr.bf16.mxu0 %v1462
        %1549 = vmatpush1.bf16.msra.mxu0 %v1461
        %1550 = vmatprep.subr.bf16.mxu0 %v1470
        %1551 = vmatpush1.bf16.msra.mxu0 %v1469
        %1552 = vmatprep.subr.bf16.mxu0 %v1524
        %1553 = vmatpush1.bf16.msra.mxu0 %v1521
        %1554 = vmatprep.subr.bf16.mxu0 0
        %1555 = vmatpush1.bf16.msra.mxu0 0
        %1556 = vmatprep.subr.bf16.mxu0 0
        %1557 = vmatpush1.bf16.msra.mxu0 0
        %1558 = vmatprep.subr.bf16.mxu0 0
        %1559 = vmatpush1.bf16.msra.mxu0 0
        %1560 = vmatprep.subr.bf16.mxu0 0
        %1561 = vmatpush1.bf16.msra.mxu0 0
        %1562 = vmatprep.subr.bf16.mxu0 0
        %1563 = vmatpush1.bf16.msra.mxu0 0
        %1564 = vmatprep.subr.bf16.mxu0 0
        %1565 = vmatpush1.bf16.msra.mxu0 0
        %1566 = vmatprep.subr.bf16.mxu0 0
        %1567 = vmatpush1.bf16.msra.mxu0 0
        %1568 = vmatprep.subr.bf16.mxu0 0
        %1569 = vmatpush1.bf16.msra.mxu0 0
        %1570 = vmatprep.subr.bf16.mxu0 0
        %1571 = vmatpush1.bf16.msra.mxu0 0
        %1572 = vmatprep.subr.bf16.mxu0 0
        %1573 = vmatpush1.bf16.msra.mxu0 0
        %1574 = vmatprep.subr.bf16.mxu0 0
        %1575 = vmatpush1.bf16.msra.mxu0 0
        %1576 = vmatprep.mubr.bf16.mxu0 0
        %1577 = vmatmul.mubr.bf16.gmra.mrb[0].mxu0 %v1518
        %v1578 = vpop.f32.mrb[0].mxu0
        %v1579 = vadd.f32 0.0, %v1578
        %v1580 = vpop.f32.mrb[0].mxu0
        %v1581 = vadd.f32 0.0, %v1580
        %v1582 = vpop.f32.mrb[0].mxu0
        %v1583 = vadd.f32 0.0, %v1582
        %v1584 = vpop.f32.mrb[0].mxu0
        %v1585 = vadd.f32 0.0, %v1584
        %1586 = vdwg.mxu0
        %1587 = vmatprep.subr.bf16.mxu0 %v1448
        %1588 = vmatpush1.bf16.msra.mxu0 %v1447
        %1589 = vmatprep.subr.bf16.mxu0 %v1456
        %1590 = vmatpush1.bf16.msra.mxu0 %v1455
        %1591 = vmatprep.subr.bf16.mxu0 %v1464
        %1592 = vmatpush1.bf16.msra.mxu0 %v1463
        %1593 = vmatprep.subr.bf16.mxu0 %v1472
        %1594 = vmatpush1.bf16.msra.mxu0 %v1471
        %1595 = vmatprep.subr.bf16.mxu0 %v1530
        %1596 = vmatpush1.bf16.msra.mxu0 %v1527
        %1597 = vmatprep.subr.bf16.mxu0 0
        %1598 = vmatpush1.bf16.msra.mxu0 0
        %1599 = vmatprep.subr.bf16.mxu0 0
        %1600 = vmatpush1.bf16.msra.mxu0 0
        %1601 = vmatprep.subr.bf16.mxu0 0
        %1602 = vmatpush1.bf16.msra.mxu0 0
        %1603 = vmatprep.subr.bf16.mxu0 0
        %1604 = vmatpush1.bf16.msra.mxu0 0
        %1605 = vmatprep.subr.bf16.mxu0 0
        %1606 = vmatpush1.bf16.msra.mxu0 0
        %1607 = vmatprep.subr.bf16.mxu0 0
        %1608 = vmatpush1.bf16.msra.mxu0 0
        %1609 = vmatprep.subr.bf16.mxu0 0
        %1610 = vmatpush1.bf16.msra.mxu0 0
        %1611 = vmatprep.subr.bf16.mxu0 0
        %1612 = vmatpush1.bf16.msra.mxu0 0
        %1613 = vmatprep.subr.bf16.mxu0 0
        %1614 = vmatpush1.bf16.msra.mxu0 0
        %1615 = vmatprep.subr.bf16.mxu0 0
        %1616 = vmatpush1.bf16.msra.mxu0 0
        %1617 = vmatprep.subr.bf16.mxu0 0
        %1618 = vmatpush1.bf16.msra.mxu0 0
        %1619 = vmatprep.mubr.bf16.mxu0 0
        %1620 = vmatmul.mubr.bf16.gmra.mrb[0].mxu0 %v1518
        %v1621 = vpop.f32.mrb[0].mxu0
        %v1622 = vadd.f32 0.0, %v1621
        %v1623 = vpop.f32.mrb[0].mxu0
        %v1624 = vadd.f32 0.0, %v1623
        %v1625 = vpop.f32.mrb[0].mxu0
        %v1626 = vadd.f32 0.0, %v1625
        %v1627 = vpop.f32.mrb[0].mxu0
        %v1628 = vadd.f32 0.0, %v1627
        %1629 = vdwg.mxu0
        %1630 = vmatprep.subr.bf16.mxu0 %v1450
        %1631 = vmatpush1.bf16.msra.mxu0 %v1449
        %1632 = vmatprep.subr.bf16.mxu0 %v1458
        %1633 = vmatpush1.bf16.msra.mxu0 %v1457
        %1634 = vmatprep.subr.bf16.mxu0 %v1466
        %1635 = vmatpush1.bf16.msra.mxu0 %v1465
        %1636 = vmatprep.subr.bf16.mxu0 %v1474
        %1637 = vmatpush1.bf16.msra.mxu0 %v1473
        %1638 = vmatprep.subr.bf16.mxu0 %v1536
        %1639 = vmatpush1.bf16.msra.mxu0 %v1533
        %1640 = vmatprep.subr.bf16.mxu0 0
        %1641 = vmatpush1.bf16.msra.mxu0 0
        %1642 = vmatprep.subr.bf16.mxu0 0
        %1643 = vmatpush1.bf16.msra.mxu0 0
        %1644 = vmatprep.subr.bf16.mxu0 0
        %1645 = vmatpush1.bf16.msra.mxu0 0
        %1646 = vmatprep.subr.bf16.mxu0 0
        %1647 = vmatpush1.bf16.msra.mxu0 0
        %1648 = vmatprep.subr.bf16.mxu0 0
        %1649 = vmatpush1.bf16.msra.mxu0 0
        %1650 = vmatprep.subr.bf16.mxu0 0
        %1651 = vmatpush1.bf16.msra.mxu0 0
        %1652 = vmatprep.subr.bf16.mxu0 0
        %1653 = vmatpush1.bf16.msra.mxu0 0
        %1654 = vmatprep.subr.bf16.mxu0 0
        %1655 = vmatpush1.bf16.msra.mxu0 0
        %1656 = vmatprep.subr.bf16.mxu0 0
        %1657 = vmatpush1.bf16.msra.mxu0 0
        %1658 = vmatprep.subr.bf16.mxu0 0
        %1659 = vmatpush1.bf16.msra.mxu0 0
        %1660 = vmatprep.subr.bf16.mxu0 0
        %1661 = vmatpush1.bf16.msra.mxu0 0
        %1662 = vmatprep.mubr.bf16.mxu0 0
        %1663 = vmatmul.mubr.bf16.gmra.mrb[0].mxu0 %v1518
        %v1664 = vpop.f32.mrb[0].mxu0
        %v1665 = vadd.f32 0.0, %v1664
        %v1666 = vpop.f32.mrb[0].mxu0
        %v1667 = vadd.f32 0.0, %v1666
        %v1668 = vpop.f32.mrb[0].mxu0
        %v1669 = vadd.f32 0.0, %v1668
        %v1670 = vpop.f32.mrb[0].mxu0
        %v1671 = vadd.f32 0.0, %v1670
        %1672 = vdwg.mxu0
        %1673 = vmatprep.subr.bf16.mxu0 %v1452
        %1674 = vmatpush1.bf16.msra.mxu0 %v1451
        %1675 = vmatprep.subr.bf16.mxu0 %v1460
        %1676 = vmatpush1.bf16.msra.mxu0 %v1459
        %1677 = vmatprep.subr.bf16.mxu0 %v1468
        %1678 = vmatpush1.bf16.msra.mxu0 %v1467
        %1679 = vmatprep.subr.bf16.mxu0 %v1476
        %1680 = vmatpush1.bf16.msra.mxu0 %v1475
        %1681 = vmatprep.subr.bf16.mxu0 %v1542
        %1682 = vmatpush1.bf16.msra.mxu0 %v1539
        %1683 = vmatprep.subr.bf16.mxu0 0
        %1684 = vmatpush1.bf16.msra.mxu0 0
        %1685 = vmatprep.subr.bf16.mxu0 0
        %1686 = vmatpush1.bf16.msra.mxu0 0
        %1687 = vmatprep.subr.bf16.mxu0 0
        %1688 = vmatpush1.bf16.msra.mxu0 0
        %1689 = vmatprep.subr.bf16.mxu0 0
        %1690 = vmatpush1.bf16.msra.mxu0 0
        %1691 = vmatprep.subr.bf16.mxu0 0
        %1692 = vmatpush1.bf16.msra.mxu0 0
        %1693 = vmatprep.subr.bf16.mxu0 0
        %1694 = vmatpush1.bf16.msra.mxu0 0
        %1695 = vmatprep.subr.bf16.mxu0 0
        %1696 = vmatpush1.bf16.msra.mxu0 0
        %1697 = vmatprep.subr.bf16.mxu0 0
        %1698 = vmatpush1.bf16.msra.mxu0 0
        %1699 = vmatprep.subr.bf16.mxu0 0
        %1700 = vmatpush1.bf16.msra.mxu0 0
        %1701 = vmatprep.subr.bf16.mxu0 0
        %1702 = vmatpush1.bf16.msra.mxu0 0
        %1703 = vmatprep.subr.bf16.mxu0 0
        %1704 = vmatpush1.bf16.msra.mxu0 0
        %1705 = vmatprep.mubr.bf16.mxu0 0
        %1706 = vmatmul.mubr.bf16.gmra.mrb[0].mxu0 %v1518
        %v1707 = vpop.f32.mrb[0].mxu0
        %v1708 = vadd.f32 0.0, %v1707
        %v1709 = vpop.f32.mrb[0].mxu0
        %v1710 = vadd.f32 0.0, %v1709
        %v1711 = vpop.f32.mrb[0].mxu0
        %v1712 = vadd.f32 0.0, %v1711
        %v1713 = vpop.f32.mrb[0].mxu0
        %v1714 = vadd.f32 0.0, %v1713
        %1715 = vdwg.mxu0
        %v1716 = vadd.f32 %v1184, %v1579
        %v1717 = vadd.f32 %v1186, %v1581
        %v1718 = vadd.f32 %v1227, %v1622
        %v1719 = vadd.f32 %v1229, %v1624
        %v1720 = vadd.f32 %v1270, %v1665
        %v1721 = vadd.f32 %v1272, %v1667
        %v1722 = vadd.f32 %v1313, %v1708
        %v1723 = vadd.f32 %v1315, %v1710
        %v1724 = vadd.f32 %v1188, %v1583
        %v1725 = vadd.f32 %v1190, %v1585
        %v1726 = vadd.f32 %v1231, %v1626
        %v1727 = vadd.f32 %v1233, %v1628
        %v1728 = vadd.f32 %v1274, %v1669
        %v1729 = vadd.f32 %v1276, %v1671
        %v1730 = vadd.f32 %v1317, %v1712
        %v1731 = vadd.f32 %v1319, %v1714
        %v1732 = vmax.f32 %v1716, 0.0
        %v1733 = vmax.f32 %v1717, 0.0
        %v1734 = vmax.f32 %v1718, 0.0
        %v1735 = vmax.f32 %v1719, 0.0
        %v1736 = vmax.f32 %v1720, 0.0
        %v1737 = vmax.f32 %v1721, 0.0
        %v1738 = vmax.f32 %v1722, 0.0
        %v1739 = vmax.f32 %v1723, 0.0
        %v1740 = vmax.f32 %v1724, 0.0
        %v1741 = vmax.f32 %v1725, 0.0
        %v1742 = vmax.f32 %v1726, 0.0
        %v1743 = vmax.f32 %v1727, 0.0
        %v1744 = vmax.f32 %v1728, 0.0
        %v1745 = vmax.f32 %v1729, 0.0
        %v1746 = vmax.f32 %v1730, 0.0
        %v1747 = vmax.f32 %v1731, 0.0
        %1748 = vmatprep.subr.mxu0 0.0
        %1749 = vmatpush1.msra.mxu0 %v379
        %1750 = vmatprep.subr.mxu0 0.0
        %1751 = vmatpush1.msra.mxu0 %v380
        %1752 = vmatprep.subr.mxu0 0.0
        %1753 = vmatpush1.msra.mxu0 %v381
        %1754 = vmatprep.subr.mxu0 0.0
        %1755 = vmatpush1.msra.mxu0 %v382
        %1756 = vmatprep.subr.mxu0 0.0
        %1757 = vmatpush1.msra.mxu0 %v383
        %1758 = vmatprep.subr.mxu0 0.0
        %1759 = vmatpush1.msra.mxu0 %v384
        %1760 = vmatprep.subr.mxu0 0.0
        %1761 = vmatpush1.msra.mxu0 %v385
        %1762 = vmatprep.subr.mxu0 0.0
        %1763 = vmatpush1.msra.mxu0 %v386
        %1764 = vmatprep.subr.mxu0 0.0
        %1765 = vmatpush1.msra.mxu0 %v387
        %1766 = vmatprep.subr.mxu0 0.0
        %1767 = vmatpush1.msra.mxu0 %v388
        %1768 = vmatprep.subr.mxu0 0.0
        %1769 = vmatpush1.msra.mxu0 %v389
        %1770 = vmatprep.subr.mxu0 0.0
        %1771 = vmatpush1.msra.mxu0 %v390
        %1772 = vmatprep.subr.mxu0 0.0
        %1773 = vmatpush1.msra.mxu0 %v391
        %1774 = vmatprep.subr.mxu0 0.0
        %1775 = vmatpush1.msra.mxu0 %v392
        %1776 = vmatprep.subr.mxu0 0.0
        %1777 = vmatpush1.msra.mxu0 %v393
        %1778 = vmatprep.subr.mxu0 0.0
        %1779 = vmatpush1.msra.mxu0 %v394
        %1780 = vmatprep.subr.mxu0 0.0
        %1781 = vmatpush1.msra.mxu0 %v395
        %1782 = vmatprep.subr.mxu0 0.0
        %1783 = vmatpush1.msra.mxu0 %v396
        %1784 = vmatprep.subr.mxu0 0.0
        %1785 = vmatpush1.msra.mxu0 %v397
        %1786 = vmatprep.subr.mxu0 0.0
        %1787 = vmatpush1.msra.mxu0 %v398
        %1788 = vmatprep.subr.mxu0 0.0
        %1789 = vmatpush1.msra.mxu0 %v399
        %1790 = vmatprep.subr.mxu0 0.0
        %1791 = vmatpush1.msra.mxu0 %v400
        %1792 = vmatprep.subr.mxu0 0.0
        %1793 = vmatpush1.msra.mxu0 %v401
        %1794 = vmatprep.subr.mxu0 0.0
        %1795 = vmatpush1.msra.mxu0 %v402
        %1796 = vmatprep.subr.mxu0 0.0
        %1797 = vmatpush1.msra.mxu0 %v403
        %1798 = vmatprep.subr.mxu0 0.0
        %1799 = vmatpush1.msra.mxu0 %v404
        %1800 = vmatprep.subr.mxu0 0.0
        %1801 = vmatpush1.msra.mxu0 %v405
        %1802 = vmatprep.subr.mxu0 0.0
        %1803 = vmatpush1.msra.mxu0 %v406
        %1804 = vmatprep.subr.mxu0 0.0
        %1805 = vmatpush1.msra.mxu0 %v407
        %1806 = vmatprep.subr.mxu0 0.0
        %1807 = vmatpush1.msra.mxu0 %v408
        %1808 = vmatprep.subr.mxu0 0.0
        %1809 = vmatpush1.msra.mxu0 %v409
        %1810 = vmatprep.subr.mxu0 0.0
        %1811 = vmatpush1.msra.mxu0 %v410
        %1812 = vmatprep.mubr.f32.mxu0 %v1733
        %1813 = vmatmul.mubr.f32.gmra.mrb[0].mxu0 %v1732
        %v1814 = vpop.f32.mrb[0].mxu0
        %v1815 = vadd.f32 0.0, %v1814
        %v1816 = vpop.f32.mrb[0].mxu0
        %1817 = vmatprep.mubr.f32.mxu0 %v1741
        %1818 = vmatmul.mubr.f32.gmra.mrb[0].mxu0 %v1740
        %v1819 = vpop.f32.mrb[0].mxu0
        %v1820 = vadd.f32 0.0, %v1819
        %v1821 = vpop.f32.mrb[0].mxu0
        %1822 = vdwg.mxu0
        %1823 = vmatprep.subr.mxu0 0.0
        %1824 = vmatpush1.msra.mxu0 %v411
        %1825 = vmatprep.subr.mxu0 0.0
        %1826 = vmatpush1.msra.mxu0 %v412
        %1827 = vmatprep.subr.mxu0 0.0
        %1828 = vmatpush1.msra.mxu0 %v413
        %1829 = vmatprep.subr.mxu0 0.0
        %1830 = vmatpush1.msra.mxu0 %v414
        %1831 = vmatprep.subr.mxu0 0.0
        %1832 = vmatpush1.msra.mxu0 %v415
        %1833 = vmatprep.subr.mxu0 0.0
        %1834 = vmatpush1.msra.mxu0 %v416
        %1835 = vmatprep.subr.mxu0 0.0
        %1836 = vmatpush1.msra.mxu0 %v417
        %1837 = vmatprep.subr.mxu0 0.0
        %1838 = vmatpush1.msra.mxu0 %v418
        %1839 = vmatprep.subr.mxu0 0.0
        %1840 = vmatpush1.msra.mxu0 %v419
        %1841 = vmatprep.subr.mxu0 0.0
        %1842 = vmatpush1.msra.mxu0 %v420
        %1843 = vmatprep.subr.mxu0 0.0
        %1844 = vmatpush1.msra.mxu0 %v421
        %1845 = vmatprep.subr.mxu0 0.0
        %1846 = vmatpush1.msra.mxu0 %v422
        %1847 = vmatprep.subr.mxu0 0.0
        %1848 = vmatpush1.msra.mxu0 %v423
        %1849 = vmatprep.subr.mxu0 0.0
        %1850 = vmatpush1.msra.mxu0 %v424
        %1851 = vmatprep.subr.mxu0 0.0
        %1852 = vmatpush1.msra.mxu0 %v425
        %1853 = vmatprep.subr.mxu0 0.0
        %1854 = vmatpush1.msra.mxu0 %v426
        %1855 = vmatprep.subr.mxu0 0.0
        %1856 = vmatpush1.msra.mxu0 %v427
        %1857 = vmatprep.subr.mxu0 0.0
        %1858 = vmatpush1.msra.mxu0 %v428
        %1859 = vmatprep.subr.mxu0 0.0
        %1860 = vmatpush1.msra.mxu0 %v429
        %1861 = vmatprep.subr.mxu0 0.0
        %1862 = vmatpush1.msra.mxu0 %v430
        %1863 = vmatprep.subr.mxu0 0.0
        %1864 = vmatpush1.msra.mxu0 %v431
        %1865 = vmatprep.subr.mxu0 0.0
        %1866 = vmatpush1.msra.mxu0 %v432
        %1867 = vmatprep.subr.mxu0 0.0
        %1868 = vmatpush1.msra.mxu0 %v433
        %1869 = vmatprep.subr.mxu0 0.0
        %1870 = vmatpush1.msra.mxu0 %v434
        %1871 = vmatprep.subr.mxu0 0.0
        %1872 = vmatpush1.msra.mxu0 %v435
        %1873 = vmatprep.subr.mxu0 0.0
        %1874 = vmatpush1.msra.mxu0 %v436
        %1875 = vmatprep.subr.mxu0 0.0
        %1876 = vmatpush1.msra.mxu0 %v437
        %1877 = vmatprep.subr.mxu0 0.0
        %1878 = vmatpush1.msra.mxu0 %v438
        %1879 = vmatprep.subr.mxu0 0.0
        %1880 = vmatpush1.msra.mxu0 %v439
        %1881 = vmatprep.subr.mxu0 0.0
        %1882 = vmatpush1.msra.mxu0 %v440
        %1883 = vmatprep.subr.mxu0 0.0
        %1884 = vmatpush1.msra.mxu0 %v441
        %1885 = vmatprep.subr.mxu0 0.0
        %1886 = vmatpush1.msra.mxu0 %v442
        %1887 = vmatprep.mubr.f32.mxu0 %v1735
        %1888 = vmatmul.mubr.f32.gmra.mrb[0].mxu0 %v1734
        %v1889 = vpop.f32.mrb[0].mxu0
        %v1890 = vadd.f32 %v1815, %v1889
        %v1891 = vpop.f32.mrb[0].mxu0
        %1892 = vmatprep.mubr.f32.mxu0 %v1743
        %1893 = vmatmul.mubr.f32.gmra.mrb[0].mxu0 %v1742
        %v1894 = vpop.f32.mrb[0].mxu0
        %v1895 = vadd.f32 %v1820, %v1894
        %v1896 = vpop.f32.mrb[0].mxu0
        %1897 = vdwg.mxu0
        %1898 = vmatprep.subr.mxu0 0.0
        %1899 = vmatpush1.msra.mxu0 %v443
        %1900 = vmatprep.subr.mxu0 0.0
        %1901 = vmatpush1.msra.mxu0 %v444
        %1902 = vmatprep.subr.mxu0 0.0
        %1903 = vmatpush1.msra.mxu0 %v445
        %1904 = vmatprep.subr.mxu0 0.0
        %1905 = vmatpush1.msra.mxu0 %v446
        %1906 = vmatprep.subr.mxu0 0.0
        %1907 = vmatpush1.msra.mxu0 %v447
        %1908 = vmatprep.subr.mxu0 0.0
        %1909 = vmatpush1.msra.mxu0 %v448
        %1910 = vmatprep.subr.mxu0 0.0
        %1911 = vmatpush1.msra.mxu0 %v449
        %1912 = vmatprep.subr.mxu0 0.0
        %1913 = vmatpush1.msra.mxu0 %v450
        %1914 = vmatprep.subr.mxu0 0.0
        %1915 = vmatpush1.msra.mxu0 %v451
        %1916 = vmatprep.subr.mxu0 0.0
        %1917 = vmatpush1.msra.mxu0 %v452
        %1918 = vmatprep.subr.mxu0 0.0
        %1919 = vmatpush1.msra.mxu0 %v453
        %1920 = vmatprep.subr.mxu0 0.0
        %1921 = vmatpush1.msra.mxu0 %v454
        %1922 = vmatprep.subr.mxu0 0.0
        %1923 = vmatpush1.msra.mxu0 %v455
        %1924 = vmatprep.subr.mxu0 0.0
        %1925 = vmatpush1.msra.mxu0 %v456
        %1926 = vmatprep.subr.mxu0 0.0
        %1927 = vmatpush1.msra.mxu0 %v457
        %1928 = vmatprep.subr.mxu0 0.0
        %1929 = vmatpush1.msra.mxu0 %v458
        %1930 = vmatprep.subr.mxu0 0.0
        %1931 = vmatpush1.msra.mxu0 %v459
        %1932 = vmatprep.subr.mxu0 0.0
        %1933 = vmatpush1.msra.mxu0 %v460
        %1934 = vmatprep.subr.mxu0 0.0
        %1935 = vmatpush1.msra.mxu0 %v461
        %1936 = vmatprep.subr.mxu0 0.0
        %1937 = vmatpush1.msra.mxu0 %v462
        %1938 = vmatprep.subr.mxu0 0.0
        %1939 = vmatpush1.msra.mxu0 %v463
        %1940 = vmatprep.subr.mxu0 0.0
        %1941 = vmatpush1.msra.mxu0 %v464
        %1942 = vmatprep.subr.mxu0 0.0
        %1943 = vmatpush1.msra.mxu0 %v465
        %1944 = vmatprep.subr.mxu0 0.0
        %1945 = vmatpush1.msra.mxu0 %v466
        %1946 = vmatprep.subr.mxu0 0.0
        %1947 = vmatpush1.msra.mxu0 %v467
        %1948 = vmatprep.subr.mxu0 0.0
        %1949 = vmatpush1.msra.mxu0 %v468
        %1950 = vmatprep.subr.mxu0 0.0
        %1951 = vmatpush1.msra.mxu0 %v469
        %1952 = vmatprep.subr.mxu0 0.0
        %1953 = vmatpush1.msra.mxu0 %v470
        %1954 = vmatprep.subr.mxu0 0.0
        %1955 = vmatpush1.msra.mxu0 %v471
        %1956 = vmatprep.subr.mxu0 0.0
        %1957 = vmatpush1.msra.mxu0 %v472
        %1958 = vmatprep.subr.mxu0 0.0
        %1959 = vmatpush1.msra.mxu0 %v473
        %1960 = vmatprep.subr.mxu0 0.0
        %1961 = vmatpush1.msra.mxu0 %v474
        %1962 = vmatprep.mubr.f32.mxu0 %v1737
        %1963 = vmatmul.mubr.f32.gmra.mrb[0].mxu0 %v1736
        %v1964 = vpop.f32.mrb[0].mxu0
        %v1965 = vadd.f32 %v1890, %v1964
        %v1966 = vpop.f32.mrb[0].mxu0
        %1967 = vmatprep.mubr.f32.mxu0 %v1745
        %1968 = vmatmul.mubr.f32.gmra.mrb[0].mxu0 %v1744
        %v1969 = vpop.f32.mrb[0].mxu0
        %v1970 = vadd.f32 %v1895, %v1969
        %v1971 = vpop.f32.mrb[0].mxu0
        %1972 = vdwg.mxu0
        %1973 = vmatprep.subr.mxu0 0.0
        %1974 = vmatpush1.msra.mxu0 %v475
        %1975 = vmatprep.subr.mxu0 0.0
        %1976 = vmatpush1.msra.mxu0 %v476
        %1977 = vmatprep.subr.mxu0 0.0
        %1978 = vmatpush1.msra.mxu0 %v477
        %1979 = vmatprep.subr.mxu0 0.0
        %1980 = vmatpush1.msra.mxu0 %v478
        %1981 = vmatprep.subr.mxu0 0.0
        %1982 = vmatpush1.msra.mxu0 %v479
        %1983 = vmatprep.subr.mxu0 0.0
        %1984 = vmatpush1.msra.mxu0 %v480
        %1985 = vmatprep.subr.mxu0 0.0
        %1986 = vmatpush1.msra.mxu0 %v481
        %1987 = vmatprep.subr.mxu0 0.0
        %1988 = vmatpush1.msra.mxu0 %v482
        %1989 = vmatprep.subr.mxu0 0.0
        %1990 = vmatpush1.msra.mxu0 %v483
        %1991 = vmatprep.subr.mxu0 0.0
        %1992 = vmatpush1.msra.mxu0 %v484
        %1993 = vmatprep.subr.mxu0 0.0
        %1994 = vmatpush1.msra.mxu0 %v485
        %1995 = vmatprep.subr.mxu0 0.0
        %1996 = vmatpush1.msra.mxu0 %v486
        %1997 = vmatprep.subr.mxu0 0.0
        %1998 = vmatpush1.msra.mxu0 %v487
        %1999 = vmatprep.subr.mxu0 0.0
        %2000 = vmatpush1.msra.mxu0 %v488
        %2001 = vmatprep.subr.mxu0 0.0
        %2002 = vmatpush1.msra.mxu0 %v489
        %2003 = vmatprep.subr.mxu0 0.0
        %2004 = vmatpush1.msra.mxu0 %v490
        %2005 = vmatprep.subr.mxu0 0.0
        %2006 = vmatpush1.msra.mxu0 %v491
        %2007 = vmatprep.subr.mxu0 0.0
        %2008 = vmatpush1.msra.mxu0 %v492
        %2009 = vmatprep.subr.mxu0 0.0
        %2010 = vmatpush1.msra.mxu0 %v493
        %2011 = vmatprep.subr.mxu0 0.0
        %2012 = vmatpush1.msra.mxu0 %v494
        %2013 = vmatprep.subr.mxu0 0.0
        %2014 = vmatpush1.msra.mxu0 %v495
        %2015 = vmatprep.subr.mxu0 0.0
        %2016 = vmatpush1.msra.mxu0 %v496
        %2017 = vmatprep.subr.mxu0 0.0
        %2018 = vmatpush1.msra.mxu0 %v497
        %2019 = vmatprep.subr.mxu0 0.0
        %2020 = vmatpush1.msra.mxu0 %v498
        %2021 = vmatprep.subr.mxu0 0.0
        %2022 = vmatpush1.msra.mxu0 %v499
        %2023 = vmatprep.subr.mxu0 0.0
        %2024 = vmatpush1.msra.mxu0 %v500
        %2025 = vmatprep.subr.mxu0 0.0
        %2026 = vmatpush1.msra.mxu0 %v501
        %2027 = vmatprep.subr.mxu0 0.0
        %2028 = vmatpush1.msra.mxu0 %v502
        %2029 = vmatprep.subr.mxu0 0.0
        %2030 = vmatpush1.msra.mxu0 %v503
        %2031 = vmatprep.subr.mxu0 0.0
        %2032 = vmatpush1.msra.mxu0 %v504
        %2033 = vmatprep.subr.mxu0 0.0
        %2034 = vmatpush1.msra.mxu0 %v505
        %2035 = vmatprep.subr.mxu0 0.0
        %2036 = vmatpush1.msra.mxu0 %v506
        %2037 = vmatprep.mubr.f32.mxu0 %v1739
        %2038 = vmatmul.mubr.f32.gmra.mrb[0].mxu0 %v1738
        %v2039 = vpop.f32.mrb[0].mxu0
        %v2040 = vadd.f32 %v1965, %v2039
        %v2041 = vpop.f32.mrb[0].mxu0
        %2042 = vmatprep.mubr.f32.mxu0 %v1747
        %2043 = vmatmul.mubr.f32.gmra.mrb[0].mxu0 %v1746
        %v2044 = vpop.f32.mrb[0].mxu0
        %v2045 = vadd.f32 %v1970, %v2044
        %v2046 = vpop.f32.mrb[0].mxu0
        %2047 = vdwg.mxu0
        %v2048 = vstv %s510
        %vm2049 = vcmask 130048
        %v2051 = vsel %vm2049, %v507, 0
        %v2054 = vsel %vm2049, %v508, 0
        %v2057 = vsel %vm2049, %v509, 0
        %2059 = vmatprep.subr.mxu0 0.0
        %2060 = vmatpush1.msra.mxu0 %v2040
        %2061 = vmatprep.subr.mxu0 0.0
        %2062 = vmatpush1.msra.mxu0 %v2045
        %2063 = vmatprep.subr.mxu0 0.0
        %2064 = vmatpush1.msra.mxu0 0.0
        %2065 = vmatprep.subr.mxu0 0.0
        %2066 = vmatpush1.msra.mxu0 0.0
        %2067 = vmatprep.subr.mxu0 0.0
        %2068 = vmatpush1.msra.mxu0 0.0
        %2069 = vmatprep.subr.mxu0 0.0
        %2070 = vmatpush1.msra.mxu0 0.0
        %2071 = vmatprep.subr.mxu0 0.0
        %2072 = vmatpush1.msra.mxu0 0.0
        %2073 = vmatprep.subr.mxu0 0.0
        %2074 = vmatpush1.msra.mxu0 0.0
        %2075 = vmatprep.subr.mxu0 0.0
        %2076 = vmatpush1.msra.mxu0 0.0
        %2077 = vmatprep.subr.mxu0 0.0
        %2078 = vmatpush1.msra.mxu0 0.0
        %2079 = vmatprep.subr.mxu0 0.0
        %2080 = vmatpush1.msra.mxu0 0.0
        %2081 = vmatprep.subr.mxu0 0.0
        %2082 = vmatpush1.msra.mxu0 0.0
        %2083 = vmatprep.subr.mxu0 0.0
        %2084 = vmatpush1.msra.mxu0 0.0
        %2085 = vmatprep.subr.mxu0 0.0
        %2086 = vmatpush1.msra.mxu0 0.0
        %2087 = vmatprep.subr.mxu0 0.0
        %2088 = vmatpush1.msra.mxu0 0.0
        %2089 = vmatprep.subr.mxu0 0.0
        %2090 = vmatpush1.msra.mxu0 0.0
        %2091 = vmatprep.subr.mxu0 0.0
        %2092 = vmatpush1.msra.mxu0 0.0
        %2093 = vmatprep.subr.mxu0 0.0
        %2094 = vmatpush1.msra.mxu0 0.0
        %2095 = vmatprep.subr.mxu0 0.0
        %2096 = vmatpush1.msra.mxu0 0.0
        %2097 = vmatprep.subr.mxu0 0.0
        %2098 = vmatpush1.msra.mxu0 0.0
        %2099 = vmatprep.subr.mxu0 0.0
        %2100 = vmatpush1.msra.mxu0 0.0
        %2101 = vmatprep.subr.mxu0 0.0
        %2102 = vmatpush1.msra.mxu0 0.0
        %2103 = vmatprep.subr.mxu0 0.0
        %2104 = vmatpush1.msra.mxu0 0.0
        %2105 = vmatprep.subr.mxu0 0.0
        %2106 = vmatpush1.msra.mxu0 0.0
        %2107 = vmatprep.subr.mxu0 0.0
        %2108 = vmatpush1.msra.mxu0 0.0
        %2109 = vmatprep.subr.mxu0 0.0
        %2110 = vmatpush1.msra.mxu0 0.0
        %2111 = vmatprep.subr.mxu0 0.0
        %2112 = vmatpush1.msra.mxu0 0.0
        %2113 = vmatprep.subr.mxu0 0.0
        %2114 = vmatpush1.msra.mxu0 0.0
        %2115 = vmatprep.subr.mxu0 0.0
        %2116 = vmatpush1.msra.mxu0 0.0
        %2117 = vmatprep.subr.mxu0 0.0
        %2118 = vmatpush1.msra.mxu0 0.0
        %2119 = vmatprep.subr.mxu0 0.0
        %2120 = vmatpush1.msra.mxu0 0.0
        %2121 = vmatprep.subr.mxu0 0.0
        %2122 = vmatpush1.msra.mxu0 0.0
        %2123 = vmatprep.mubr.f32.mxu0 0.0
        %2124 = vmatmul.mubr.f32.gmra.mrb[0].mxu0 %v2051
        %v2125 = vpop.f32.mrb[0].mxu0
        %v2126 = vadd.f32 %v2048, %v2125
        %v2127 = vpop.f32.mrb[0].mxu0
        %2128 = vmatprep.mubr.f32.mxu0 0.0
        %2129 = vmatmul.mubr.f32.gmra.mrb[0].mxu0 %v2054
        %v2130 = vpop.f32.mrb[0].mxu0
        %v2131 = vadd.f32 %v2048, %v2130
        %v2132 = vpop.f32.mrb[0].mxu0
        %2133 = vmatprep.mubr.f32.mxu0 0.0
        %2134 = vmatmul.mubr.f32.gmra.mrb[0].mxu0 %v2057
        %v2135 = vpop.f32.mrb[0].mxu0
        %v2136 = vadd.f32 %v2048, %v2135
        %v2137 = vpop.f32.mrb[0].mxu0
        %2138 = vdwg.mxu0
        %2139 = vst [vmem:[%s255] sm:$0xff] %v2126
        %2140 = vst [vmem:[%s255 + $0x8] sm:$0xff] %v2131
        %2141 = vst [vmem:[%s255 + $0x10] sm:$0xff] %v2136
        %p2142 = scmp.lt.s32.totalorder %s19, 1
        %s2143 = scalar_select %p2142, %s19, 1
        %s2144 = smul.addr %s2143, 3
        %s2145 = smul.addr %s2144, 8
        %s2146 = scalar_lea.vmem %s5, %s2145
        // Predicated region
        $region49: #{out_block_forward.1} parent=39 // pred_check
          %p2147 = pneg %p147
        $region50: #{out_block_forward.1} parent=39 // pred_check_branch
          %2149 = sbr.rel (%p2147) target = $region52
        $region51: #{out_block_forward.1} parent=39 // pred_region
          _
        $region52: #{out_block_forward.1} parent=39 // pred_fallthru
          _
      $region40: #{out_block_forward.1} parent=5 // pred_fallthru
        _
      %p2150 = scmp.le.s32.totalorder 2, %s14
      // Predicated region
      $region53: #{out_block_forward.1} parent=5 // pred_check
        %p2151 = pneg %p2150
      $region54: #{out_block_forward.1} parent=5 // pred_check_branch
        %2153 = sbr.rel (%p2151) target = $region56
      $region55: #{out_block_forward.1} parent=5 // pred_region
        %s2154 = ssub.s32 %s14, 2
        // Predicated region
        $region57: #{out_block_forward.1} parent=55 // pred_check
          %p2155 = pneg %p153
        $region58: #{out_block_forward.1} parent=55 // pred_check_branch
          %2157 = sbr.rel (%p2155) target = $region60
        $region59: #{out_block_forward.1} parent=55 // pred_region
          %p2158 = scmp.lt.s32.totalorder %s20, 1
          %s2159 = scalar_select %p2158, %s20, 1
          %s2160 = smul.addr %s2159, 3
          %s2161 = smul.addr %s2160, 8
          %s2162 = scalar_lea.vmem %s5, %s2161
        $region60: #{out_block_forward.1} parent=55 // pred_fallthru
          _
      $region56: #{out_block_forward.1} parent=5 // pred_fallthru
        _
    $region6: #{out_block_forward.1} parent=1 // loop_footer
      %s18 = sadd.s32 1, %s14
    $region7: #{out_block_forward.1} parent=1 // loop_footer_branch
      %13 = sbr.rel target = $region3
    $region8: #{out_block_forward.1} parent=1 // loop_exit
      _
    %2163 = vsyncpa [#allocation4], 1
    %s2164 = scalar_lea.sflag [#allocation4], 1
    %2165 = vsyncpa %s2164, 1
    %2166 = vsyncpa [#allocation6], 1

</llo_original>
